<compile_context>
chip_gen: v6e
topology: v6e:2x2x1
jax: 0.10.0
libtpu: 0.0.40
codegen_flags: <defaults>
</compile_context>

<pallas_src>
import jax
import jax.numpy as jnp
from jax.experimental import pallas as pl
from jax.experimental.pallas import tpu as pltpu

EPS = 1e-5


def attention_kernel(x_chw_ref, x_hwc_ref, wq_ref, bq_ref, wk_ref, bk_ref,
                     wv_ref, bv_ref, wo_ref, bo_ref, o_ref):
    # Blocks:
    #   x_chw_ref : (bt, C, HW)   channels on sublanes, spatial on lanes
    #   x_hwc_ref : (bt, HW, C)   spatial on sublanes (q path only)
    #   weights   : (C, C); biases: (C, 1) column / (1, C) row
    #   o_ref     : (bt, C, HW)   lane-dense output store
    bt = x_chw_ref.shape[0]

    # Hoist constant weight/bias loads out of the per-image loop (JAX does not
    # CSE repeated loads/broadcasts inside the unrolled loop).
    wq = wq_ref[...]   # (C_in, C_out), sqrt(C) scale already folded in
    bq = bq_ref[...]   # (1, C), scaled
    wk = wk_ref[...]   # (C_out, C_in)
    bk = bk_ref[...]
    wv = wv_ref[...]
    bv = bv_ref[...]
    wo = wo_ref[...]
    bo = bo_ref[...]

    for bi in range(bt):
        x_cs = x_chw_ref[bi]                                    # (C, HW)
        x_sc = x_hwc_ref[bi]                                    # (HW, C)

        # ---- InstanceNorm2d: per-channel stats over spatial, single pass
        # (mean and E[x^2] together), biased variance, eps=1e-5.
        mean_c = jnp.mean(x_cs, axis=-1, keepdims=True)         # (C, 1)
        msq_c = jnp.mean(x_cs * x_cs, axis=-1, keepdims=True)   # (C, 1)
        rstd_c = jax.lax.rsqrt(msq_c - mean_c * mean_c + EPS)
        xn_cs = (x_cs - mean_c) * rstd_c                        # (C, HW) lane-dense

        # Same normalization in the (HW, C) view for the q path.  Recomputing the
        # stats on this (narrow) view is cheaper/safer than transposing the tiny
        # (C,1) stat vectors in-kernel.
        mean_r = jnp.mean(x_sc, axis=0, keepdims=True)          # (1, C)
        msq_r = jnp.mean(x_sc * x_sc, axis=0, keepdims=True)
        rstd_r = jax.lax.rsqrt(msq_r - mean_r * mean_r + EPS)
        xn_sc = (x_sc - mean_r) * rstd_r                        # (HW, C)

        # ---- 1x1 convs as three separate, tile-aligned matmuls
        q = jnp.dot(xn_sc, wq, preferred_element_type=jnp.float32) + bq   # (HW, C)
        k = jnp.dot(wk, xn_cs, preferred_element_type=jnp.float32) + bk   # (C, HW)
        v = jnp.dot(wv, xn_cs, preferred_element_type=jnp.float32) + bv   # (C, HW)

        # ---- attention scores: plain NN matmul, sqrt(C) scale folded into q.
        # TODO(synk): for very large H*W (>= ~2048 positions) flash-tile this over
        # the key axis (online softmax) so the HW x HW scores fit v7x's 64 MiB
        # VMEM; unnecessary at BigGAN attention sizes.
        s = jnp.dot(q, k, preferred_element_type=jnp.float32)             # (HW, HW)
        s = s - jnp.max(s, axis=-1, keepdims=True)
        p = jnp.exp(s)
        inv = pl.reciprocal(jnp.sum(p, axis=-1, keepdims=True), approx=True)  # (HW,1)
        attn = p * inv                                                    # (HW, HW)

        # out[c, i] = sum_j v[c, j] * attn[i, j]   (NT contraction on last dims)
        out = jax.lax.dot_general(v, attn, (((1,), (1,)), ((), ())),
                                  preferred_element_type=jnp.float32)     # (C, HW)

        # ---- out_layer (1x1 conv) + residual on the normalized input
        y = jnp.dot(wo, out, preferred_element_type=jnp.float32) + bo + xn_cs
        o_ref[bi] = y                                                     # lane-dense


def _pick_batch_block(b, hw):
    # Enough per-step work to amortize ~0.35us grid-step overhead, but keep the
    # per-image HW x HW f32 attention intermediates comfortably inside VMEM,
    # cap the static unroll of the per-image loop, and keep >= 2 grid steps when
    # possible so a 2-TensorCore chip (v7x) gets work on both cores.
    per_elem_bytes = 3 * hw * hw * 4
    bt = max(1, min(b, (16 * 2 ** 20) // max(per_elem_bytes, 1)))
    bt = min(bt, 8)                      # bound code size from static unroll
    if b >= 2:
        bt = min(bt, max(1, b // 2))
    while b % bt:
        bt -= 1
    return bt


def attention_block(x_nchw, w_qkv, b_qkv, w_out, b_out, *, batch_block=None):
    """x_nchw: (B, C, H, W) float32; conv weights in PyTorch layout (Cout, Cin, 1, 1)."""
    b, c, h, w = x_nchw.shape
    hw = h * w

    # Two cheap layouts of the input: lane-dense (C, HW) for k/v/residual/store,
    # and (HW, C) for the q path (keeps every matmul a plain NN/NT MXU op, no
    # in-kernel transposes).
    x_chw = x_nchw.reshape(b, c, hw)
    x_hwc = jnp.transpose(x_nchw, (0, 2, 3, 1)).reshape(b, hw, c)

    wm = w_qkv.reshape(3 * c, c).astype(jnp.float32)
    scale = jnp.float32(c) ** 0.5                      # faithful: MULTIPLY by sqrt(C)
    wq_t = jnp.transpose(wm[0:c]) * scale              # (C_in, C_out), scale folded
    bq_row = (b_qkv[0:c] * scale).reshape(1, c)
    wk = wm[c:2 * c]                                   # (C_out, C_in)
    bk_col = b_qkv[c:2 * c].reshape(c, 1)
    wv = wm[2 * c:3 * c]
    bv_col = b_qkv[2 * c:3 * c].reshape(c, 1)
    wo = w_out.reshape(c, c).astype(jnp.float32)
    bo_col = b_out.reshape(c, 1)

    if batch_block is None:
        batch_block = _pick_batch_block(b, hw)
    if b % batch_block:
        raise ValueError(f"batch {b} must be divisible by batch_block {batch_block}")
    grid = (b // batch_block,)

    # Size scoped VMEM from the actual working set (default limit is 16/32 MiB).
    block_in_bytes = batch_block * c * hw * 4
    est = (2 * 2 * block_in_bytes          # x in both layouts, double-buffered
           + 2 * block_in_bytes            # output block, double-buffered
           + 16 * c * c * 4                # weights/biases (+ tile padding slack)
           + 3 * hw * hw * 4               # scores / exp / attn intermediates
           + (4 << 20))                    # headroom for compiler temporaries
    vmem_limit = int(min(64 * 2 ** 20, max(32 * 2 ** 20, est)))

    out = pl.pallas_call(
        attention_kernel,
        out_shape=jax.ShapeDtypeStruct((b, c, hw), jnp.float32),
        grid_spec=pltpu.PrefetchScalarGridSpec(
            num_scalar_prefetch=0,
            grid=grid,
            in_specs=[
                pl.BlockSpec((batch_block, c, hw), lambda i: (i, 0, 0)),
                pl.BlockSpec((batch_block, hw, c), lambda i: (i, 0, 0)),
                # Constant-index weight/bias blocks (tiny at this C; Pallas keeps
                # revisited blocks resident, so no per-step re-DMA).
                pl.BlockSpec((c, c), lambda i: (0, 0)),
                pl.BlockSpec((1, c), lambda i: (0, 0)),
                pl.BlockSpec((c, c), lambda i: (0, 0)),
                pl.BlockSpec((c, 1), lambda i: (0, 0)),
                pl.BlockSpec((c, c), lambda i: (0, 0)),
                pl.BlockSpec((c, 1), lambda i: (0, 0)),
                pl.BlockSpec((c, c), lambda i: (0, 0)),
                pl.BlockSpec((c, 1), lambda i: (0, 0)),
            ],
            out_specs=pl.BlockSpec((batch_block, c, hw), lambda i: (i, 0, 0)),
        ),
        compiler_params=pltpu.CompilerParams(
            dimension_semantics=("parallel",),
            vmem_limit_bytes=vmem_limit),
    )(x_chw, x_hwc, wq_t, bq_row, wk, bk_col, wv, bv_col, wo, bo_col)

    # (B, C, HW) is already channel-major: just reshape back to NCHW.
    return out.reshape(b, c, h, w)


def attention_block_ref(x_nchw, w_qkv, b_qkv, w_out, b_out):
    """Pure-JAX reference mirroring the PyTorch forward, for verification."""
    b, c, h, w = x_nchw.shape
    mean = jnp.mean(x_nchw, axis=(2, 3), keepdims=True)
    var = jnp.mean((x_nchw - mean) ** 2, axis=(2, 3), keepdims=True)
    xn = (x_nchw - mean) / jnp.sqrt(var + EPS)

    def conv1x1(t, wgt, bias):  # t: NCHW, wgt: (Cout, Cin, 1, 1)
        wm = wgt.reshape(wgt.shape[0], wgt.shape[1])
        return jnp.einsum('oc,bchw->bohw', wm, t) + bias.reshape(1, -1, 1, 1)

    qkv = conv1x1(xn, w_qkv, b_qkv)
    q, k, v = qkv[:, :c], qkv[:, c:2 * c], qkv[:, 2 * c:]
    q = jnp.transpose(q, (0, 2, 3, 1)).reshape(b, h * w, c)
    k = k.reshape(b, c, h * w)
    v = jnp.transpose(v, (0, 2, 3, 1)).reshape(b, h * w, c)
    dot = jnp.einsum('bic,bcj->bij', q, k) * (c ** 0.5)
    attn = jax.nn.softmax(dot, axis=-1)
    out = jnp.einsum('bij,bjc->bic', attn, v).reshape(b, h, w, c)
    out = jnp.transpose(out, (0, 3, 1, 2))
    return conv1x1(out, w_out, b_out) + xn


if __name__ == "__main__":
    B, C, H, W = 2, 4, 16, 16
    key = jax.random.PRNGKey(0)
    k_x, k_wq, k_bq, k_wo, k_bo = jax.random.split(key, 5)

    x = jax.random.normal(k_x, (B, C, H, W), dtype=jnp.float32)
    # Deterministic synthetic parameters (PyTorch conv weight layout).
    w_qkv = jax.random.normal(k_wq, (3 * C, C, 1, 1), dtype=jnp.float32) * 0.1
    b_qkv = jax.random.normal(k_bq, (3 * C,), dtype=jnp.float32) * 0.1
    w_out = jax.random.normal(k_wo, (C, C, 1, 1), dtype=jnp.float32) * 0.1
    b_out = jax.random.normal(k_bo, (C,), dtype=jnp.float32) * 0.1

    y = jax.block_until_ready(attention_block(x, w_qkv, b_qkv, w_out, b_out))
    y_ref = jax.block_until_ready(attention_block_ref(x, w_qkv, b_qkv, w_out, b_out))

    assert y.shape == (B, C, H, W)
    # 1e-3 tolerance: pl.reciprocal(approx=True) in the softmax adds a small
    # (~1e-4-level) relative error vs the exact-division reference.
    assert jnp.allclose(y, y_ref, atol=1e-3, rtol=1e-3), "kernel vs reference mismatch"
    print("KERNEL_OK")
</pallas_src>

<mosaic_0001>
module attributes {stable_mosaic.version = 11 : i64} {
  func.func @attention_kernel(%arg0: i32, %arg1: memref<1x4x256xf32, #tpu.memory_space<vmem>>, %arg2: memref<1x256x4xf32, #tpu.memory_space<vmem>>, %arg3: memref<4x4xf32, #tpu.memory_space<vmem>>, %arg4: memref<1x4xf32, #tpu.memory_space<vmem>>, %arg5: memref<4x4xf32, #tpu.memory_space<vmem>>, %arg6: memref<4x1xf32, #tpu.memory_space<vmem>>, %arg7: memref<4x4xf32, #tpu.memory_space<vmem>>, %arg8: memref<4x1xf32, #tpu.memory_space<vmem>>, %arg9: memref<4x4xf32, #tpu.memory_space<vmem>>, %arg10: memref<4x1xf32, #tpu.memory_space<vmem>>, %arg11: memref<1x4x256xf32, #tpu.memory_space<vmem>>) attributes {dimension_semantics = [#tpu.dimension_semantics<parallel>], iteration_bounds = array<i64: 2>, scalar_prefetch = 0 : i64, scratch_operands = 0 : i64, tpu.core_type = #tpu.core_type<tc>, window_params = [{transform_indices = @transform_0, window_bounds = array<i64: 1, 4, 256>}, {transform_indices = @transform_1, window_bounds = array<i64: 1, 256, 4>}, {pipeline_mode = #tpu.pipeline_mode<synchronous>, transform_indices = @transform_2, window_bounds = array<i64: 4, 4>}, {pipeline_mode = #tpu.pipeline_mode<synchronous>, transform_indices = @transform_3, window_bounds = array<i64: 1, 4>}, {pipeline_mode = #tpu.pipeline_mode<synchronous>, transform_indices = @transform_4, window_bounds = array<i64: 4, 4>}, {pipeline_mode = #tpu.pipeline_mode<synchronous>, transform_indices = @transform_5, window_bounds = array<i64: 4, 1>}, {pipeline_mode = #tpu.pipeline_mode<synchronous>, transform_indices = @transform_6, window_bounds = array<i64: 4, 4>}, {pipeline_mode = #tpu.pipeline_mode<synchronous>, transform_indices = @transform_7, window_bounds = array<i64: 4, 1>}, {pipeline_mode = #tpu.pipeline_mode<synchronous>, transform_indices = @transform_8, window_bounds = array<i64: 4, 4>}, {pipeline_mode = #tpu.pipeline_mode<synchronous>, transform_indices = @transform_9, window_bounds = array<i64: 4, 1>}, {transform_indices = @transform_10, window_bounds = array<i64: 1, 4, 256>}]} {
    %c0 = arith.constant 0 : index
    %c0_0 = arith.constant 0 : index
    %0 = vector.load %arg3[%c0, %c0_0] : memref<4x4xf32, #tpu.memory_space<vmem>>, vector<4x4xf32>
    %c0_1 = arith.constant 0 : index
    %c0_2 = arith.constant 0 : index
    %1 = vector.load %arg4[%c0_1, %c0_2] : memref<1x4xf32, #tpu.memory_space<vmem>>, vector<1x4xf32>
    %c0_3 = arith.constant 0 : index
    %c0_4 = arith.constant 0 : index
    %2 = vector.load %arg5[%c0_3, %c0_4] : memref<4x4xf32, #tpu.memory_space<vmem>>, vector<4x4xf32>
    %c0_5 = arith.constant 0 : index
    %c0_6 = arith.constant 0 : index
    %3 = vector.load %arg6[%c0_5, %c0_6] : memref<4x1xf32, #tpu.memory_space<vmem>>, vector<4x1xf32>
    %c0_7 = arith.constant 0 : index
    %c0_8 = arith.constant 0 : index
    %4 = vector.load %arg7[%c0_7, %c0_8] : memref<4x4xf32, #tpu.memory_space<vmem>>, vector<4x4xf32>
    %c0_9 = arith.constant 0 : index
    %c0_10 = arith.constant 0 : index
    %5 = vector.load %arg8[%c0_9, %c0_10] : memref<4x1xf32, #tpu.memory_space<vmem>>, vector<4x1xf32>
    %c0_11 = arith.constant 0 : index
    %c0_12 = arith.constant 0 : index
    %6 = vector.load %arg9[%c0_11, %c0_12] : memref<4x4xf32, #tpu.memory_space<vmem>>, vector<4x4xf32>
    %c0_13 = arith.constant 0 : index
    %c0_14 = arith.constant 0 : index
    %7 = vector.load %arg10[%c0_13, %c0_14] : memref<4x1xf32, #tpu.memory_space<vmem>>, vector<4x1xf32>
    %c0_15 = arith.constant 0 : index
    %c0_16 = arith.constant 0 : index
    %c0_17 = arith.constant 0 : index
    %8 = vector.load %arg1[%c0_15, %c0_16, %c0_17] : memref<1x4x256xf32, #tpu.memory_space<vmem>>, vector<1x4x256xf32>
    %9 = vector.shape_cast %8 : vector<1x4x256xf32> to vector<4x256xf32>
    %c0_18 = arith.constant 0 : index
    %c0_19 = arith.constant 0 : index
    %c0_20 = arith.constant 0 : index
    %10 = vector.load %arg2[%c0_18, %c0_19, %c0_20] : memref<1x256x4xf32, #tpu.memory_space<vmem>>, vector<1x256x4xf32>
    %11 = vector.shape_cast %10 : vector<1x256x4xf32> to vector<256x4xf32>
    %cst = arith.constant dense<0.000000e+00> : vector<4xf32>
    %12 = vector.multi_reduction <add>, %9, %cst [1] : vector<4x256xf32> to vector<4xf32>
    %13 = vector.shape_cast %12 : vector<4xf32> to vector<4x1xf32>
    %cst_21 = arith.constant 2.560000e+02 : f32
    %14 = vector.broadcast %cst_21 : f32 to vector<4x1xf32>
    %15 = arith.divf %13, %14 : vector<4x1xf32>
    %16 = arith.mulf %9, %9 : vector<4x256xf32>
    %cst_22 = arith.constant dense<0.000000e+00> : vector<4xf32>
    %17 = vector.multi_reduction <add>, %16, %cst_22 [1] : vector<4x256xf32> to vector<4xf32>
    %18 = vector.shape_cast %17 : vector<4xf32> to vector<4x1xf32>
    %cst_23 = arith.constant 2.560000e+02 : f32
    %19 = vector.broadcast %cst_23 : f32 to vector<4x1xf32>
    %20 = arith.divf %18, %19 : vector<4x1xf32>
    %21 = arith.mulf %15, %15 : vector<4x1xf32>
    %22 = arith.subf %20, %21 : vector<4x1xf32>
    %cst_24 = arith.constant 9.99999974E-6 : f32
    %23 = vector.broadcast %cst_24 : f32 to vector<4x1xf32>
    %24 = arith.addf %22, %23 : vector<4x1xf32>
    %25 = math.rsqrt %24 : vector<4x1xf32>
    %26 = vector.broadcast %15 : vector<4x1xf32> to vector<4x256xf32>
    %27 = arith.subf %9, %26 : vector<4x256xf32>
    %28 = vector.broadcast %25 : vector<4x1xf32> to vector<4x256xf32>
    %29 = arith.mulf %27, %28 : vector<4x256xf32>
    %cst_25 = arith.constant dense<0.000000e+00> : vector<4xf32>
    %30 = vector.multi_reduction <add>, %11, %cst_25 [0] : vector<256x4xf32> to vector<4xf32>
    %31 = vector.shape_cast %30 : vector<4xf32> to vector<1x4xf32>
    %cst_26 = arith.constant 2.560000e+02 : f32
    %32 = vector.broadcast %cst_26 : f32 to vector<1x4xf32>
    %33 = arith.divf %31, %32 : vector<1x4xf32>
    %34 = arith.mulf %11, %11 : vector<256x4xf32>
    %cst_27 = arith.constant dense<0.000000e+00> : vector<4xf32>
    %35 = vector.multi_reduction <add>, %34, %cst_27 [0] : vector<256x4xf32> to vector<4xf32>
    %36 = vector.shape_cast %35 : vector<4xf32> to vector<1x4xf32>
    %cst_28 = arith.constant 2.560000e+02 : f32
    %37 = vector.broadcast %cst_28 : f32 to vector<1x4xf32>
    %38 = arith.divf %36, %37 : vector<1x4xf32>
    %39 = arith.mulf %33, %33 : vector<1x4xf32>
    %40 = arith.subf %38, %39 : vector<1x4xf32>
    %cst_29 = arith.constant 9.99999974E-6 : f32
    %41 = vector.broadcast %cst_29 : f32 to vector<1x4xf32>
    %42 = arith.addf %40, %41 : vector<1x4xf32>
    %43 = math.rsqrt %42 : vector<1x4xf32>
    %44 = vector.broadcast %33 : vector<1x4xf32> to vector<256x4xf32>
    %45 = arith.subf %11, %44 : vector<256x4xf32>
    %46 = vector.broadcast %43 : vector<1x4xf32> to vector<256x4xf32>
    %47 = arith.mulf %45, %46 : vector<256x4xf32>
    %cst_30 = arith.constant dense<0.000000e+00> : vector<256x4xf32>
    %48 = tpu.matmul %47, %0, %cst_30 {dimension_numbers = #tpu.dot_dimension_numbers<[1], [0], [0], [1], [0, 0, 1, 1], [], []>} : vector<256x4xf32>, vector<4x4xf32>, vector<256x4xf32> -> vector<256x4xf32>
    %49 = vector.broadcast %1 : vector<1x4xf32> to vector<256x4xf32>
    %50 = arith.addf %48, %49 : vector<256x4xf32>
    %cst_31 = arith.constant dense<0.000000e+00> : vector<4x256xf32>
    %51 = tpu.matmul %2, %29, %cst_31 {dimension_numbers = #tpu.dot_dimension_numbers<[1], [0], [0], [1], [0, 0, 1, 1], [], []>} : vector<4x4xf32>, vector<4x256xf32>, vector<4x256xf32> -> vector<4x256xf32>
    %52 = vector.broadcast %3 : vector<4x1xf32> to vector<4x256xf32>
    %53 = arith.addf %51, %52 : vector<4x256xf32>
    %cst_32 = arith.constant dense<0.000000e+00> : vector<4x256xf32>
    %54 = tpu.matmul %4, %29, %cst_32 {dimension_numbers = #tpu.dot_dimension_numbers<[1], [0], [0], [1], [0, 0, 1, 1], [], []>} : vector<4x4xf32>, vector<4x256xf32>, vector<4x256xf32> -> vector<4x256xf32>
    %55 = vector.broadcast %5 : vector<4x1xf32> to vector<4x256xf32>
    %56 = arith.addf %54, %55 : vector<4x256xf32>
    %cst_33 = arith.constant dense<0.000000e+00> : vector<256x256xf32>
    %57 = tpu.matmul %50, %53, %cst_33 {dimension_numbers = #tpu.dot_dimension_numbers<[1], [0], [0], [1], [0, 0, 1, 1], [], []>} : vector<256x4xf32>, vector<4x256xf32>, vector<256x256xf32> -> vector<256x256xf32>
    %cst_34 = arith.constant dense<0xFF800000> : vector<256xf32>
    %58 = vector.multi_reduction <maximumf>, %57, %cst_34 [1] : vector<256x256xf32> to vector<256xf32>
    %59 = vector.shape_cast %58 : vector<256xf32> to vector<256x1xf32>
    %60 = vector.broadcast %59 : vector<256x1xf32> to vector<256x256xf32>
    %61 = arith.subf %57, %60 : vector<256x256xf32>
    %62 = math.exp %61 : vector<256x256xf32>
    %cst_35 = arith.constant dense<0.000000e+00> : vector<256xf32>
    %63 = vector.multi_reduction <add>, %62, %cst_35 [1] : vector<256x256xf32> to vector<256xf32>
    %64 = vector.shape_cast %63 : vector<256xf32> to vector<256x1xf32>
    %65 = tpu.reciprocal %64 {approx = true} : vector<256x1xf32> -> vector<256x1xf32>
    %66 = vector.broadcast %65 : vector<256x1xf32> to vector<256x256xf32>
    %67 = arith.mulf %62, %66 : vector<256x256xf32>
    %cst_36 = arith.constant dense<0.000000e+00> : vector<4x256xf32>
    %68 = tpu.matmul %56, %67, %cst_36 {dimension_numbers = #tpu.dot_dimension_numbers<[1], [1], [0], [0], [0, 0, 1, 0], [], []>} : vector<4x256xf32>, vector<256x256xf32>, vector<4x256xf32> -> vector<4x256xf32>
    %cst_37 = arith.constant dense<0.000000e+00> : vector<4x256xf32>
    %69 = tpu.matmul %6, %68, %cst_37 {dimension_numbers = #tpu.dot_dimension_numbers<[1], [0], [0], [1], [0, 0, 1, 1], [], []>} : vector<4x4xf32>, vector<4x256xf32>, vector<4x256xf32> -> vector<4x256xf32>
    %70 = vector.broadcast %7 : vector<4x1xf32> to vector<4x256xf32>
    %71 = arith.addf %69, %70 : vector<4x256xf32>
    %72 = arith.addf %71, %29 : vector<4x256xf32>
    %c0_38 = arith.constant 0 : index
    %c0_39 = arith.constant 0 : index
    %c0_40 = arith.constant 0 : index
    %73 = vector.load %arg11[%c0_38, %c0_39, %c0_40] : memref<1x4x256xf32, #tpu.memory_space<vmem>>, vector<1x4x256xf32>
    %74 = vector.shape_cast %73 : vector<1x4x256xf32> to vector<4x256xf32>
    %75 = vector.shape_cast %72 : vector<4x256xf32> to vector<1x4x256xf32>
    tpu.vector_store %arg11[%c0_38, %c0_39, %c0_40], %75 {strides = array<i32>} : memref<1x4x256xf32, #tpu.memory_space<vmem>>, vector<1x4x256xf32>,
    return
  }
  func.func @transform_0(%arg0: i32) -> (i32, i32, i32) {
    %c0_i32 = arith.constant 0 : i32
    %c0_i32_0 = arith.constant 0 : i32
    %c0_i32_1 = arith.constant 0 : i32
    return %arg0, %c0_i32, %c0_i32_0 : i32, i32, i32
  }
  func.func @transform_1(%arg0: i32) -> (i32, i32, i32) {
    %c0_i32 = arith.constant 0 : i32
    %c0_i32_0 = arith.constant 0 : i32
    %c0_i32_1 = arith.constant 0 : i32
    return %arg0, %c0_i32, %c0_i32_0 : i32, i32, i32
  }
  func.func @transform_2(%arg0: i32) -> (i32, i32) {
    %c0_i32 = arith.constant 0 : i32
    %c0_i32_0 = arith.constant 0 : i32
    %c0_i32_1 = arith.constant 0 : i32
    return %c0_i32, %c0_i32_0 : i32, i32
  }
  func.func @transform_3(%arg0: i32) -> (i32, i32) {
    %c0_i32 = arith.constant 0 : i32
    %c0_i32_0 = arith.constant 0 : i32
    %c0_i32_1 = arith.constant 0 : i32
    return %c0_i32, %c0_i32_0 : i32, i32
  }
  func.func @transform_4(%arg0: i32) -> (i32, i32) {
    %c0_i32 = arith.constant 0 : i32
    %c0_i32_0 = arith.constant 0 : i32
    %c0_i32_1 = arith.constant 0 : i32
    return %c0_i32, %c0_i32_0 : i32, i32
  }
  func.func @transform_5(%arg0: i32) -> (i32, i32) {
    %c0_i32 = arith.constant 0 : i32
    %c0_i32_0 = arith.constant 0 : i32
    %c0_i32_1 = arith.constant 0 : i32
    return %c0_i32, %c0_i32_0 : i32, i32
  }
  func.func @transform_6(%arg0: i32) -> (i32, i32) {
    %c0_i32 = arith.constant 0 : i32
    %c0_i32_0 = arith.constant 0 : i32
    %c0_i32_1 = arith.constant 0 : i32
    return %c0_i32, %c0_i32_0 : i32, i32
  }
  func.func @transform_7(%arg0: i32) -> (i32, i32) {
    %c0_i32 = arith.constant 0 : i32
    %c0_i32_0 = arith.constant 0 : i32
    %c0_i32_1 = arith.constant 0 : i32
    return %c0_i32, %c0_i32_0 : i32, i32
  }
  func.func @transform_8(%arg0: i32) -> (i32, i32) {
    %c0_i32 = arith.constant 0 : i32
    %c0_i32_0 = arith.constant 0 : i32
    %c0_i32_1 = arith.constant 0 : i32
    return %c0_i32, %c0_i32_0 : i32, i32
  }
  func.func @transform_9(%arg0: i32) -> (i32, i32) {
    %c0_i32 = arith.constant 0 : i32
    %c0_i32_0 = arith.constant 0 : i32
    %c0_i32_1 = arith.constant 0 : i32
    return %c0_i32, %c0_i32_0 : i32, i32
  }
  func.func @transform_10(%arg0: i32) -> (i32, i32, i32) {
    %c0_i32 = arith.constant 0 : i32
    %c0_i32_0 = arith.constant 0 : i32
    %c0_i32_1 = arith.constant 0 : i32
    return %arg0, %c0_i32, %c0_i32_0 : i32, i32, i32
  }
}

</mosaic_0001>

<llo_original>
// kernel: tpu_custom_call.1
$region0: #{tpu_custom_call.1}
  #allocation0 [shape = 'u32[]', space=smem, size = 0x4, offset = 0x4, fixed_abs, tag = 'smem constant byte address 0x4 - core index']
  #allocation1 [shape = 'u32[144,128]{1,0:T(1,128)}', space=vmem, size = 0x12000, scoped, tag = 'internal scratch']
  %s0 = inlined_call_operand.vmem [shape: f32[2,4,256], index: 0, kind: input, shape index: {}]
  %s1 = inlined_call_operand.vmem [shape: f32[2,256,4], index: 1, kind: input, shape index: {}]
  %s2 = inlined_call_operand.vmem [shape: f32[4,4], index: 2, kind: input, shape index: {}]
  %s3 = inlined_call_operand.vmem [shape: f32[1,4], index: 3, kind: input, shape index: {}]
  %s4 = inlined_call_operand.vmem [shape: f32[4,4], index: 4, kind: input, shape index: {}]
  %s5 = inlined_call_operand.vmem [shape: f32[4,1], index: 5, kind: input, shape index: {}]
  %s6 = inlined_call_operand.vmem [shape: f32[4,4], index: 6, kind: input, shape index: {}]
  %s7 = inlined_call_operand.vmem [shape: f32[4,1], index: 7, kind: input, shape index: {}]
  %s8 = inlined_call_operand.vmem [shape: f32[4,4], index: 8, kind: input, shape index: {}]
  %s9 = inlined_call_operand.vmem [shape: f32[4,1], index: 9, kind: input, shape index: {}]
  %s10 = inlined_call_operand.hbm [shape: f32[2,4,256], index: 10, kind: output, shape index: {}]
  %s11 = sld [smem:[#allocation0]]
  $region73: #{tpu_custom_call.1} parent=0
    _
  %s13 = ssub.s32 1, %s11
  %s14 = scalar_select 0, %s13, %s11
  $region1: #{tpu_custom_call.1} parent=0
    #allocation2 [shape = 'u8[8192]{0}', space=vmem, size = 0x2000, scoped, tag = 'output window, operand 0']
    #allocation3 [shape = 's32[2]{0}', space=sflag, size = 0x8, scoped, tag = 'scoped memory for tpu_custom_call.1']
    %15 = vsyncpa [#allocation3], 0
    %s16 = scalar_lea.sflag [#allocation3], 1
    %17 = vsyncpa %s16, 0
    loop: start=0, step=1, limit=4
    $region2: #{tpu_custom_call.1} parent=1 // loop_pre_header
      _
    $region3: #{tpu_custom_call.1} parent=1 // loop_header
      %s19 = sphi 0, %s23
      %p20 = scmp.ge.s32.totalorder %s19, 4
      %s29 = sphi 0, %s31
      %s32 = sphi 0, %s29
      %s33 = sphi 0, %s32
      %s49 = sphi 0, %s33
      %s55 = sphi 0, %s57
      %s58 = sphi 0, %s55
      %s59 = sphi 0, %s58
      %s75 = sphi 0, %s59
      %s79 = sphi 0, %s79
      %s81 = sphi 0, %s79
      %s82 = sphi 0, %s81
      %s96 = sphi 0, %s82
      %s100 = sphi 0, %s100
      %s102 = sphi 0, %s100
      %s103 = sphi 0, %s102
      %s117 = sphi 0, %s103
      %s121 = sphi 0, %s121
      %s123 = sphi 0, %s121
      %s124 = sphi 0, %s123
      %s138 = sphi 0, %s124
      %s142 = sphi 0, %s142
      %s144 = sphi 0, %s142
      %s145 = sphi 0, %s144
      %s159 = sphi 0, %s145
      %s163 = sphi 0, %s163
      %s165 = sphi 0, %s163
      %s166 = sphi 0, %s165
      %s180 = sphi 0, %s166
      %s184 = sphi 0, %s184
      %s186 = sphi 0, %s184
      %s187 = sphi 0, %s186
      %s201 = sphi 0, %s187
      %s205 = sphi 0, %s205
      %s207 = sphi 0, %s205
      %s208 = sphi 0, %s207
      %s222 = sphi 0, %s208
      %s226 = sphi 0, %s226
      %s228 = sphi 0, %s226
      %s229 = sphi 0, %s228
      %s243 = sphi 0, %s229
      %s249 = sphi 0, %s251
      %s252 = sphi 0, %s249
      %s253 = sphi 0, %s252
      %s269 = sphi 0, %s253
    $region4: #{tpu_custom_call.1} parent=1 // loop_header_branch
      %22 = sbr.rel (%p20) target = $region8
    $region5: #{tpu_custom_call.1} parent=1 // loop_body
      %s24 = ssub.s32 %s19, 1
      %s25 = ssub.s32 %s19, 2
      %s26 = sadd.s32 %s19, 1
      %s27 = ssub.s32 %s19, %s26
      %p28 = scmp.eq.s32.totalorder %s27, 0
      %s30 = sadd.s32 %s29, 1
      %s31 = scalar_select %p28, %s29, %s30
      %p34 = pneg %p28
      %p35 = scmp.eq.s32.totalorder %s19, 1
      %p36 = por %p34, %p35
      %p37 = scmp.ne.s32.totalorder %s29, %s32
      %p38 = scmp.eq.s32.totalorder %s19, 0
      %p39 = por %p37, %p38
      %p40 = scmp.ne.s32.totalorder %s29, %s32
      %p41 = scmp.eq.s32.totalorder %s24, 1
      %p42 = por %p40, %p41
      %p43 = scmp.ne.s32.totalorder %s32, %s33
      %p44 = scmp.eq.s32.totalorder %s24, 0
      %p45 = por %p43, %p44
      %p46 = scmp.ne.s32.totalorder %s32, %s33
      %p47 = scmp.eq.s32.totalorder %s25, 1
      %p48 = por %p46, %p47
      %p50 = scmp.ne.s32.totalorder %s33, %s49
      %p51 = scmp.eq.s32.totalorder %s25, 0
      %p52 = por %p50, %p51
      %s53 = ssub.s32 %s19, %s26
      %p54 = scmp.eq.s32.totalorder %s53, 0
      %s56 = sadd.s32 %s55, 1
      %s57 = scalar_select %p54, %s55, %s56
      %p60 = pneg %p54
      %p61 = scmp.eq.s32.totalorder %s19, 1
      %p62 = por %p60, %p61
      %p63 = scmp.ne.s32.totalorder %s55, %s58
      %p64 = scmp.eq.s32.totalorder %s19, 0
      %p65 = por %p63, %p64
      %p66 = scmp.ne.s32.totalorder %s55, %s58
      %p67 = scmp.eq.s32.totalorder %s24, 1
      %p68 = por %p66, %p67
      %p69 = scmp.ne.s32.totalorder %s58, %s59
      %p70 = scmp.eq.s32.totalorder %s24, 0
      %p71 = por %p69, %p70
      %p72 = scmp.ne.s32.totalorder %s58, %s59
      %p73 = scmp.eq.s32.totalorder %s25, 1
      %p74 = por %p72, %p73
      %p76 = scmp.ne.s32.totalorder %s59, %s75
      %p77 = scmp.eq.s32.totalorder %s25, 0
      %p78 = por %p76, %p77
      %s80 = sadd.s32 %s79, 1
      %p83 = scmp.eq.s32.totalorder %s19, 1
      %p84 = scmp.ne.s32.totalorder %s79, %s81
      %p85 = scmp.eq.s32.totalorder %s19, 0
      %p86 = por %p84, %p85
      %p87 = scmp.ne.s32.totalorder %s79, %s81
      %p88 = scmp.eq.s32.totalorder %s24, 1
      %p89 = por %p87, %p88
      %p90 = scmp.ne.s32.totalorder %s81, %s82
      %p91 = scmp.eq.s32.totalorder %s24, 0
      %p92 = por %p90, %p91
      %p93 = scmp.ne.s32.totalorder %s81, %s82
      %p94 = scmp.eq.s32.totalorder %s25, 1
      %p95 = por %p93, %p94
      %p97 = scmp.ne.s32.totalorder %s82, %s96
      %p98 = scmp.eq.s32.totalorder %s25, 0
      %p99 = por %p97, %p98
      %s101 = sadd.s32 %s100, 1
      %p104 = scmp.eq.s32.totalorder %s19, 1
      %p105 = scmp.ne.s32.totalorder %s100, %s102
      %p106 = scmp.eq.s32.totalorder %s19, 0
      %p107 = por %p105, %p106
      %p108 = scmp.ne.s32.totalorder %s100, %s102
      %p109 = scmp.eq.s32.totalorder %s24, 1
      %p110 = por %p108, %p109
      %p111 = scmp.ne.s32.totalorder %s102, %s103
      %p112 = scmp.eq.s32.totalorder %s24, 0
      %p113 = por %p111, %p112
      %p114 = scmp.ne.s32.totalorder %s102, %s103
      %p115 = scmp.eq.s32.totalorder %s25, 1
      %p116 = por %p114, %p115
      %p118 = scmp.ne.s32.totalorder %s103, %s117
      %p119 = scmp.eq.s32.totalorder %s25, 0
      %p120 = por %p118, %p119
      %s122 = sadd.s32 %s121, 1
      %p125 = scmp.eq.s32.totalorder %s19, 1
      %p126 = scmp.ne.s32.totalorder %s121, %s123
      %p127 = scmp.eq.s32.totalorder %s19, 0
      %p128 = por %p126, %p127
      %p129 = scmp.ne.s32.totalorder %s121, %s123
      %p130 = scmp.eq.s32.totalorder %s24, 1
      %p131 = por %p129, %p130
      %p132 = scmp.ne.s32.totalorder %s123, %s124
      %p133 = scmp.eq.s32.totalorder %s24, 0
      %p134 = por %p132, %p133
      %p135 = scmp.ne.s32.totalorder %s123, %s124
      %p136 = scmp.eq.s32.totalorder %s25, 1
      %p137 = por %p135, %p136
      %p139 = scmp.ne.s32.totalorder %s124, %s138
      %p140 = scmp.eq.s32.totalorder %s25, 0
      %p141 = por %p139, %p140
      %s143 = sadd.s32 %s142, 1
      %p146 = scmp.eq.s32.totalorder %s19, 1
      %p147 = scmp.ne.s32.totalorder %s142, %s144
      %p148 = scmp.eq.s32.totalorder %s19, 0
      %p149 = por %p147, %p148
      %p150 = scmp.ne.s32.totalorder %s142, %s144
      %p151 = scmp.eq.s32.totalorder %s24, 1
      %p152 = por %p150, %p151
      %p153 = scmp.ne.s32.totalorder %s144, %s145
      %p154 = scmp.eq.s32.totalorder %s24, 0
      %p155 = por %p153, %p154
      %p156 = scmp.ne.s32.totalorder %s144, %s145
      %p157 = scmp.eq.s32.totalorder %s25, 1
      %p158 = por %p156, %p157
      %p160 = scmp.ne.s32.totalorder %s145, %s159
      %p161 = scmp.eq.s32.totalorder %s25, 0
      %p162 = por %p160, %p161
      %s164 = sadd.s32 %s163, 1
      %p167 = scmp.eq.s32.totalorder %s19, 1
      %p168 = scmp.ne.s32.totalorder %s163, %s165
      %p169 = scmp.eq.s32.totalorder %s19, 0
      %p170 = por %p168, %p169
      %p171 = scmp.ne.s32.totalorder %s163, %s165
      %p172 = scmp.eq.s32.totalorder %s24, 1
      %p173 = por %p171, %p172
      %p174 = scmp.ne.s32.totalorder %s165, %s166
      %p175 = scmp.eq.s32.totalorder %s24, 0
      %p176 = por %p174, %p175
      %p177 = scmp.ne.s32.totalorder %s165, %s166
      %p178 = scmp.eq.s32.totalorder %s25, 1
      %p179 = por %p177, %p178
      %p181 = scmp.ne.s32.totalorder %s166, %s180
      %p182 = scmp.eq.s32.totalorder %s25, 0
      %p183 = por %p181, %p182
      %s185 = sadd.s32 %s184, 1
      %p188 = scmp.eq.s32.totalorder %s19, 1
      %p189 = scmp.ne.s32.totalorder %s184, %s186
      %p190 = scmp.eq.s32.totalorder %s19, 0
      %p191 = por %p189, %p190
      %p192 = scmp.ne.s32.totalorder %s184, %s186
      %p193 = scmp.eq.s32.totalorder %s24, 1
      %p194 = por %p192, %p193
      %p195 = scmp.ne.s32.totalorder %s186, %s187
      %p196 = scmp.eq.s32.totalorder %s24, 0
      %p197 = por %p195, %p196
      %p198 = scmp.ne.s32.totalorder %s186, %s187
      %p199 = scmp.eq.s32.totalorder %s25, 1
      %p200 = por %p198, %p199
      %p202 = scmp.ne.s32.totalorder %s187, %s201
      %p203 = scmp.eq.s32.totalorder %s25, 0
      %p204 = por %p202, %p203
      %s206 = sadd.s32 %s205, 1
      %p209 = scmp.eq.s32.totalorder %s19, 1
      %p210 = scmp.ne.s32.totalorder %s205, %s207
      %p211 = scmp.eq.s32.totalorder %s19, 0
      %p212 = por %p210, %p211
      %p213 = scmp.ne.s32.totalorder %s205, %s207
      %p214 = scmp.eq.s32.totalorder %s24, 1
      %p215 = por %p213, %p214
      %p216 = scmp.ne.s32.totalorder %s207, %s208
      %p217 = scmp.eq.s32.totalorder %s24, 0
      %p218 = por %p216, %p217
      %p219 = scmp.ne.s32.totalorder %s207, %s208
      %p220 = scmp.eq.s32.totalorder %s25, 1
      %p221 = por %p219, %p220
      %p223 = scmp.ne.s32.totalorder %s208, %s222
      %p224 = scmp.eq.s32.totalorder %s25, 0
      %p225 = por %p223, %p224
      %s227 = sadd.s32 %s226, 1
      %p230 = scmp.eq.s32.totalorder %s19, 1
      %p231 = scmp.ne.s32.totalorder %s226, %s228
      %p232 = scmp.eq.s32.totalorder %s19, 0
      %p233 = por %p231, %p232
      %p234 = scmp.ne.s32.totalorder %s226, %s228
      %p235 = scmp.eq.s32.totalorder %s24, 1
      %p236 = por %p234, %p235
      %p237 = scmp.ne.s32.totalorder %s228, %s229
      %p238 = scmp.eq.s32.totalorder %s24, 0
      %p239 = por %p237, %p238
      %p240 = scmp.ne.s32.totalorder %s228, %s229
      %p241 = scmp.eq.s32.totalorder %s25, 1
      %p242 = por %p240, %p241
      %p244 = scmp.ne.s32.totalorder %s229, %s243
      %p245 = scmp.eq.s32.totalorder %s25, 0
      %p246 = por %p244, %p245
      %s247 = ssub.s32 %s19, %s26
      %p248 = scmp.eq.s32.totalorder %s247, 0
      %s250 = sadd.s32 %s249, 1
      %s251 = scalar_select %p248, %s249, %s250
      %p254 = pneg %p248
      %p255 = scmp.eq.s32.totalorder %s19, 1
      %p256 = por %p254, %p255
      %p257 = scmp.ne.s32.totalorder %s249, %s252
      %p258 = scmp.eq.s32.totalorder %s19, 0
      %p259 = por %p257, %p258
      %p260 = scmp.ne.s32.totalorder %s249, %s252
      %p261 = scmp.eq.s32.totalorder %s24, 1
      %p262 = por %p260, %p261
      %p263 = scmp.ne.s32.totalorder %s252, %s253
      %p264 = scmp.eq.s32.totalorder %s24, 0
      %p265 = por %p263, %p264
      %p266 = scmp.ne.s32.totalorder %s252, %s253
      %p267 = scmp.eq.s32.totalorder %s25, 1
      %p268 = por %p266, %p267
      %p270 = scmp.ne.s32.totalorder %s253, %s269
      %p271 = scmp.eq.s32.totalorder %s25, 0
      %p272 = por %p270, %p271
      %p273 = scmp.le.s32.totalorder 1, %s19
      %p274 = scmp.lt.s32.totalorder %s19, 3
      %p275 = pnand %p273, %p274
      %p276 = pneg %p275
      // Predicated region
      $region9: #{tpu_custom_call.1} parent=5 // pred_check
        _
      $region10: #{tpu_custom_call.1} parent=5 // pred_check_branch
        %278 = sbr.rel (%p275) target = $region12
      $region11: #{tpu_custom_call.1} parent=5 // pred_region
        %s279 = ssub.s32 %s19, 1
        // Predicated region
        $region13: #{tpu_custom_call.1} parent=11 // pred_check
          %p280 = pneg %p92
        $region14: #{tpu_custom_call.1} parent=11 // pred_check_branch
          %282 = sbr.rel (%p280) target = $region16
        $region15: #{tpu_custom_call.1} parent=11 // pred_region
          _
        $region16: #{tpu_custom_call.1} parent=11 // pred_fallthru
          _
        // Predicated region
        $region17: #{tpu_custom_call.1} parent=11 // pred_check
          %p283 = pneg %p113
        $region18: #{tpu_custom_call.1} parent=11 // pred_check_branch
          %285 = sbr.rel (%p283) target = $region20
        $region19: #{tpu_custom_call.1} parent=11 // pred_region
          _
        $region20: #{tpu_custom_call.1} parent=11 // pred_fallthru
          _
        // Predicated region
        $region21: #{tpu_custom_call.1} parent=11 // pred_check
          %p286 = pneg %p134
        $region22: #{tpu_custom_call.1} parent=11 // pred_check_branch
          %288 = sbr.rel (%p286) target = $region24
        $region23: #{tpu_custom_call.1} parent=11 // pred_region
          _
        $region24: #{tpu_custom_call.1} parent=11 // pred_fallthru
          _
        // Predicated region
        $region25: #{tpu_custom_call.1} parent=11 // pred_check
          %p289 = pneg %p155
        $region26: #{tpu_custom_call.1} parent=11 // pred_check_branch
          %291 = sbr.rel (%p289) target = $region28
        $region27: #{tpu_custom_call.1} parent=11 // pred_region
          _
        $region28: #{tpu_custom_call.1} parent=11 // pred_fallthru
          _
        // Predicated region
        $region29: #{tpu_custom_call.1} parent=11 // pred_check
          %p292 = pneg %p176
        $region30: #{tpu_custom_call.1} parent=11 // pred_check_branch
          %294 = sbr.rel (%p292) target = $region32
        $region31: #{tpu_custom_call.1} parent=11 // pred_region
          _
        $region32: #{tpu_custom_call.1} parent=11 // pred_fallthru
          _
        // Predicated region
        $region33: #{tpu_custom_call.1} parent=11 // pred_check
          %p295 = pneg %p197
        $region34: #{tpu_custom_call.1} parent=11 // pred_check_branch
          %297 = sbr.rel (%p295) target = $region36
        $region35: #{tpu_custom_call.1} parent=11 // pred_region
          _
        $region36: #{tpu_custom_call.1} parent=11 // pred_fallthru
          _
        // Predicated region
        $region37: #{tpu_custom_call.1} parent=11 // pred_check
          %p298 = pneg %p218
        $region38: #{tpu_custom_call.1} parent=11 // pred_check_branch
          %300 = sbr.rel (%p298) target = $region40
        $region39: #{tpu_custom_call.1} parent=11 // pred_region
          _
        $region40: #{tpu_custom_call.1} parent=11 // pred_fallthru
          _
        // Predicated region
        $region41: #{tpu_custom_call.1} parent=11 // pred_check
          %p301 = pneg %p239
        $region42: #{tpu_custom_call.1} parent=11 // pred_check_branch
          %303 = sbr.rel (%p301) target = $region44
        $region43: #{tpu_custom_call.1} parent=11 // pred_region
          _
        $region44: #{tpu_custom_call.1} parent=11 // pred_fallthru
          _
      $region12: #{tpu_custom_call.1} parent=5 // pred_fallthru
        _
      %p304 = scmp.lt.s32.totalorder %s19, 2
      // Predicated region
      $region45: #{tpu_custom_call.1} parent=5 // pred_check
        %p305 = pneg %p304
      $region46: #{tpu_custom_call.1} parent=5 // pred_check_branch
        %307 = sbr.rel (%p305) target = $region48
      $region47: #{tpu_custom_call.1} parent=5 // pred_region
        // Predicated region
        $region49: #{tpu_custom_call.1} parent=47 // pred_check
          %p308 = pneg %p39
        $region50: #{tpu_custom_call.1} parent=47 // pred_check_branch
          %310 = sbr.rel (%p308) target = $region52
        $region51: #{tpu_custom_call.1} parent=47 // pred_region
          %p311 = scmp.lt.s32.totalorder %s19, 1
          %s312 = scalar_select %p311, %s19, 1
          %s313 = smul.addr %s312, 2
          %s314 = smul.addr %s313, 4
          %s315 = scalar_lea.vmem %s0, %s314
        $region52: #{tpu_custom_call.1} parent=47 // pred_fallthru
          _
        // Predicated region
        $region53: #{tpu_custom_call.1} parent=47 // pred_check
          %p316 = pneg %p65
        $region54: #{tpu_custom_call.1} parent=47 // pred_check_branch
          %318 = sbr.rel (%p316) target = $region56
        $region55: #{tpu_custom_call.1} parent=47 // pred_region
          %p319 = scmp.lt.s32.totalorder %s19, 1
          %s320 = scalar_select %p319, %s19, 1
          %s321 = smul.addr %s320, 32
          %s322 = smul.addr %s321, 8
          %s323 = scalar_lea.vmem %s1, %s322
        $region56: #{tpu_custom_call.1} parent=47 // pred_fallthru
          _
      $region48: #{tpu_custom_call.1} parent=5 // pred_fallthru
        _
      %p324 = scmp.le.s32.totalorder 1, %s19
      %p325 = scmp.lt.s32.totalorder %s19, 3
      %p326 = pnand %p324, %p325
      %p327 = pneg %p326
      // Predicated region
      $region57: #{tpu_custom_call.1} parent=5 // pred_check
        _
      $region58: #{tpu_custom_call.1} parent=5 // pred_check_branch
        %329 = sbr.rel (%p326) target = $region60
      $region59: #{tpu_custom_call.1} parent=5 // pred_region
        %s330 = ssub.s32 %s19, 1
        %p331 = scmp.lt.s32.totalorder %s24, 1
        %s332 = scalar_select %p331, %s24, 1
        %s333 = smul.addr %s332, 2
        %s334 = smul.addr %s333, 4
        %s335 = scalar_lea.vmem %s0, %s334
        %p336 = pneg %p45
        %p337 = pneg %p42
        %p338 = scmp.lt.s32.totalorder %s24, 1
        %s339 = scalar_select %p338, %s24, 1
        %s340 = smul.addr %s339, 32
        %s341 = smul.addr %s340, 8
        %s342 = scalar_lea.vmem %s1, %s341
        %p343 = pneg %p71
        %p344 = pneg %p68
        %p345 = pneg %p92
        %p346 = pneg %p89
        %p347 = pneg %p113
        %p348 = pneg %p110
        %p349 = pneg %p134
        %p350 = pneg %p131
        %p351 = pneg %p155
        %p352 = pneg %p152
        %p353 = pneg %p176
        %p354 = pneg %p173
        %p355 = pneg %p197
        %p356 = pneg %p194
        %p357 = pneg %p218
        %p358 = pneg %p215
        %p359 = pneg %p239
        %p360 = pneg %p236
        %p361 = pneg %p265
        %p362 = pneg %p262
        %s363 = sand.u32 %s252, 1
        %s364 = scalar_lea.sflag [#allocation3], %s363
        %s365 = sand.u32 %s252, 1
        %s366 = smul.addr %s365, 8
        %s367 = scalar_lea.vmem [#allocation2], %s366
        %p368 = scmp.lt.s32.totalorder %s24, 1
        %s369 = scalar_select %p368, %s24, 1
        %s370 = smul.addr %s369, 2
        %s371 = smul.addr %s370, 4
        %s372 = scalar_lea.vmem %s0, %s371
        %p373 = scmp.lt.s32.totalorder %s24, 1
        %s374 = scalar_select %p373, %s24, 1
        %s375 = smul.addr %s374, 32
        %s376 = smul.addr %s375, 8
        %s377 = scalar_lea.vmem %s1, %s376
        %v378 = vld [vmem:[%s2] sm:$0xf]
        %v379 = vld [vmem:[%s3] sm:$0x1]
        %v380 = vld [vmem:[%s4] sm:$0xf]
        %v381 = vld [vmem:[%s5] sm:$0xf]
        %v382 = vld [vmem:[%s6] sm:$0xf]
        %v383 = vld [vmem:[%s7] sm:$0xf]
        %v384 = vld [vmem:[%s8] sm:$0xf]
        %v385 = vld [vmem:[%s9] sm:$0xf]
        %v386 = vld [vmem:[%s372] sm:$0xff]
        %v387 = vld [vmem:[%s377] sm:$0xff]
        %v388 = vld [vmem:[%s377 + $0x8] sm:$0xff]
        %v389 = vld [vmem:[%s377 + $0x10] sm:$0xff]
        %v390 = vld [vmem:[%s377 + $0x18] sm:$0xff]
        %v391 = vld [vmem:[%s377 + $0x20] sm:$0xff]
        %v392 = vld [vmem:[%s377 + $0x28] sm:$0xff]
        %v393 = vld [vmem:[%s377 + $0x30] sm:$0xff]
        %v394 = vld [vmem:[%s377 + $0x38] sm:$0xff]
        %v395 = vld [vmem:[%s377 + $0x40] sm:$0xff]
        %v396 = vld [vmem:[%s377 + $0x48] sm:$0xff]
        %v397 = vld [vmem:[%s377 + $0x50] sm:$0xff]
        %v398 = vld [vmem:[%s377 + $0x58] sm:$0xff]
        %v399 = vld [vmem:[%s377 + $0x60] sm:$0xff]
        %v400 = vld [vmem:[%s377 + $0x68] sm:$0xff]
        %v401 = vld [vmem:[%s377 + $0x70] sm:$0xff]
        %v402 = vld [vmem:[%s377 + $0x78] sm:$0xff]
        %v403 = vld [vmem:[%s377 + $0x80] sm:$0xff]
        %v404 = vld [vmem:[%s377 + $0x88] sm:$0xff]
        %v405 = vld [vmem:[%s377 + $0x90] sm:$0xff]
        %v406 = vld [vmem:[%s377 + $0x98] sm:$0xff]
        %v407 = vld [vmem:[%s377 + $0xa0] sm:$0xff]
        %v408 = vld [vmem:[%s377 + $0xa8] sm:$0xff]
        %v409 = vld [vmem:[%s377 + $0xb0] sm:$0xff]
        %v410 = vld [vmem:[%s377 + $0xb8] sm:$0xff]
        %v411 = vld [vmem:[%s377 + $0xc0] sm:$0xff]
        %v412 = vld [vmem:[%s377 + $0xc8] sm:$0xff]
        %v413 = vld [vmem:[%s377 + $0xd0] sm:$0xff]
        %v414 = vld [vmem:[%s377 + $0xd8] sm:$0xff]
        %v415 = vld [vmem:[%s377 + $0xe0] sm:$0xff]
        %v416 = vld [vmem:[%s377 + $0xe8] sm:$0xff]
        %v417 = vld [vmem:[%s377 + $0xf0] sm:$0xff]
        %v418 = vld [vmem:[%s377 + $0xf8] sm:$0xff]
        %v420 = vcombine.high %v386, %v386
        %vm422 = vcmask 1043456
        %v423 = vsel %vm422, %v386, 0.0
        %v424 = vsel %vm422, %v420, 0.0
        %v425 = vadd.f32 %v423, %v424
        %426 = vadd.xlane.f32.xlu0 %v425
        %v427 = vpop.xlane.xlu0 %426
        %v428 = vrcp.pop 256.0
        %v429 = vmul.f32 %v427, %v428
        %v430 = vmul.f32 %v386, %v386
        %v432 = vcombine.high %v430, %v430
        %v434 = vsel %vm422, %v430, 0.0
        %v435 = vsel %vm422, %v432, 0.0
        %v436 = vadd.f32 %v434, %v435
        %437 = vadd.xlane.f32.xlu0 %v436
        %v438 = vpop.xlane.xlu0 %437
        %v439 = vmul.f32 %v438, %v428
        %v440 = vmul.f32 %v429, %v429
        %v441 = vsub.f32 %v439, %v440
        %v442 = vadd.f32 %v441, 1e-05
        %v443 = vrsqrt.pop %v442
        %v446 = vunpack.c.l.s4 839922192
        %v447 = vunpack.c.0.s8 %v446
        %v448 = vlaneseq
        %v449 = vshrl.u32 %v448, 7
        %v450 = vsub.s32 %v447, %v449
        %v451 = vrot.slane %v429, %v450
        %v453 = vsub.f32 %v386, %v451
        %v456 = vunpack.c.l.s4 839922192
        %v457 = vunpack.c.0.s8 %v456
        %v458 = vlaneseq
        %v459 = vshrl.u32 %v458, 7
        %v460 = vsub.s32 %v457, %v459
        %v461 = vrot.slane %v443, %v460
        %v463 = vmul.f32 %v453, %v461
        %vm464 = vcmask 31744
        %v465 = vsel %vm464, %v387, 0.0
        %v466 = vsel %vm464, %v388, 0.0
        %v467 = vadd.f32 %v465, %v466
        %v468 = vsel %vm464, %v389, 0.0
        %v469 = vadd.f32 %v467, %v468
        %v470 = vsel %vm464, %v390, 0.0
        %v471 = vadd.f32 %v469, %v470
        %v472 = vsel %vm464, %v391, 0.0
        %v473 = vadd.f32 %v471, %v472
        %v474 = vsel %vm464, %v392, 0.0
        %v475 = vadd.f32 %v473, %v474
        %v476 = vsel %vm464, %v393, 0.0
        %v477 = vadd.f32 %v475, %v476
        %v478 = vsel %vm464, %v394, 0.0
        %v479 = vadd.f32 %v477, %v478
        %v480 = vsel %vm464, %v395, 0.0
        %v481 = vadd.f32 %v479, %v480
        %v482 = vsel %vm464, %v396, 0.0
        %v483 = vadd.f32 %v481, %v482
        %v484 = vsel %vm464, %v397, 0.0
        %v485 = vadd.f32 %v483, %v484
        %v486 = vsel %vm464, %v398, 0.0
        %v487 = vadd.f32 %v485, %v486
        %v488 = vsel %vm464, %v399, 0.0
        %v489 = vadd.f32 %v487, %v488
        %v490 = vsel %vm464, %v400, 0.0
        %v491 = vadd.f32 %v489, %v490
        %v492 = vsel %vm464, %v401, 0.0
        %v493 = vadd.f32 %v491, %v492
        %v494 = vsel %vm464, %v402, 0.0
        %v495 = vadd.f32 %v493, %v494
        %v496 = vsel %vm464, %v403, 0.0
        %v497 = vadd.f32 %v495, %v496
        %v498 = vsel %vm464, %v404, 0.0
        %v499 = vadd.f32 %v497, %v498
        %v500 = vsel %vm464, %v405, 0.0
        %v501 = vadd.f32 %v499, %v500
        %v502 = vsel %vm464, %v406, 0.0
        %v503 = vadd.f32 %v501, %v502
        %v504 = vsel %vm464, %v407, 0.0
        %v505 = vadd.f32 %v503, %v504
        %v506 = vsel %vm464, %v408, 0.0
        %v507 = vadd.f32 %v505, %v506
        %v508 = vsel %vm464, %v409, 0.0
        %v509 = vadd.f32 %v507, %v508
        %v510 = vsel %vm464, %v410, 0.0
        %v511 = vadd.f32 %v509, %v510
        %v512 = vsel %vm464, %v411, 0.0
        %v513 = vadd.f32 %v511, %v512
        %v514 = vsel %vm464, %v412, 0.0
        %v515 = vadd.f32 %v513, %v514
        %v516 = vsel %vm464, %v413, 0.0
        %v517 = vadd.f32 %v515, %v516
        %v518 = vsel %vm464, %v414, 0.0
        %v519 = vadd.f32 %v517, %v518
        %v520 = vsel %vm464, %v415, 0.0
        %v521 = vadd.f32 %v519, %v520
        %v522 = vsel %vm464, %v416, 0.0
        %v523 = vadd.f32 %v521, %v522
        %v524 = vsel %vm464, %v417, 0.0
        %v525 = vadd.f32 %v523, %v524
        %v526 = vsel %vm464, %v418, 0.0
        %v527 = vadd.f32 %v525, %v526
        %v528 = vrot.slane %v527, 4
        %v529 = vadd.f32 %v527, %v528
        %v530 = vrot.slane %v529, 2
        %v531 = vadd.f32 %v529, %v530
        %v532 = vrot.slane %v531, 1
        %v533 = vadd.f32 %v531, %v532
        %v534 = vmul.f32 %v533, %v428
        %v535 = vmul.f32 %v387, %v387
        %v536 = vmul.f32 %v388, %v388
        %v537 = vmul.f32 %v389, %v389
        %v538 = vmul.f32 %v390, %v390
        %v539 = vmul.f32 %v391, %v391
        %v540 = vmul.f32 %v392, %v392
        %v541 = vmul.f32 %v393, %v393
        %v542 = vmul.f32 %v394, %v394
        %v543 = vmul.f32 %v395, %v395
        %v544 = vmul.f32 %v396, %v396
        %v545 = vmul.f32 %v397, %v397
        %v546 = vmul.f32 %v398, %v398
        %v547 = vmul.f32 %v399, %v399
        %v548 = vmul.f32 %v400, %v400
        %v549 = vmul.f32 %v401, %v401
        %v550 = vmul.f32 %v402, %v402
        %v551 = vmul.f32 %v403, %v403
        %v552 = vmul.f32 %v404, %v404
        %v553 = vmul.f32 %v405, %v405
        %v554 = vmul.f32 %v406, %v406
        %v555 = vmul.f32 %v407, %v407
        %v556 = vmul.f32 %v408, %v408
        %v557 = vmul.f32 %v409, %v409
        %v558 = vmul.f32 %v410, %v410
        %v559 = vmul.f32 %v411, %v411
        %v560 = vmul.f32 %v412, %v412
        %v561 = vmul.f32 %v413, %v413
        %v562 = vmul.f32 %v414, %v414
        %v563 = vmul.f32 %v415, %v415
        %v564 = vmul.f32 %v416, %v416
        %v565 = vmul.f32 %v417, %v417
        %v566 = vmul.f32 %v418, %v418
        %v567 = vsel %vm464, %v535, 0.0
        %v568 = vsel %vm464, %v536, 0.0
        %v569 = vadd.f32 %v567, %v568
        %v570 = vsel %vm464, %v537, 0.0
        %v571 = vadd.f32 %v569, %v570
        %v572 = vsel %vm464, %v538, 0.0
        %v573 = vadd.f32 %v571, %v572
        %v574 = vsel %vm464, %v539, 0.0
        %v575 = vadd.f32 %v573, %v574
        %v576 = vsel %vm464, %v540, 0.0
        %v577 = vadd.f32 %v575, %v576
        %v578 = vsel %vm464, %v541, 0.0
        %v579 = vadd.f32 %v577, %v578
        %v580 = vsel %vm464, %v542, 0.0
        %v581 = vadd.f32 %v579, %v580
        %v582 = vsel %vm464, %v543, 0.0
        %v583 = vadd.f32 %v581, %v582
        %v584 = vsel %vm464, %v544, 0.0
        %v585 = vadd.f32 %v583, %v584
        %v586 = vsel %vm464, %v545, 0.0
        %v587 = vadd.f32 %v585, %v586
        %v588 = vsel %vm464, %v546, 0.0
        %v589 = vadd.f32 %v587, %v588
        %v590 = vsel %vm464, %v547, 0.0
        %v591 = vadd.f32 %v589, %v590
        %v592 = vsel %vm464, %v548, 0.0
        %v593 = vadd.f32 %v591, %v592
        %v594 = vsel %vm464, %v549, 0.0
        %v595 = vadd.f32 %v593, %v594
        %v596 = vsel %vm464, %v550, 0.0
        %v597 = vadd.f32 %v595, %v596
        %v598 = vsel %vm464, %v551, 0.0
        %v599 = vadd.f32 %v597, %v598
        %v600 = vsel %vm464, %v552, 0.0
        %v601 = vadd.f32 %v599, %v600
        %v602 = vsel %vm464, %v553, 0.0
        %v603 = vadd.f32 %v601, %v602
        %v604 = vsel %vm464, %v554, 0.0
        %v605 = vadd.f32 %v603, %v604
        %v606 = vsel %vm464, %v555, 0.0
        %v607 = vadd.f32 %v605, %v606
        %v608 = vsel %vm464, %v556, 0.0
        %v609 = vadd.f32 %v607, %v608
        %v610 = vsel %vm464, %v557, 0.0
        %v611 = vadd.f32 %v609, %v610
        %v612 = vsel %vm464, %v558, 0.0
        %v613 = vadd.f32 %v611, %v612
        %v614 = vsel %vm464, %v559, 0.0
        %v615 = vadd.f32 %v613, %v614
        %v616 = vsel %vm464, %v560, 0.0
        %v617 = vadd.f32 %v615, %v616
        %v618 = vsel %vm464, %v561, 0.0
        %v619 = vadd.f32 %v617, %v618
        %v620 = vsel %vm464, %v562, 0.0
        %v621 = vadd.f32 %v619, %v620
        %v622 = vsel %vm464, %v563, 0.0
        %v623 = vadd.f32 %v621, %v622
        %v624 = vsel %vm464, %v564, 0.0
        %v625 = vadd.f32 %v623, %v624
        %v626 = vsel %vm464, %v565, 0.0
        %v627 = vadd.f32 %v625, %v626
        %v628 = vsel %vm464, %v566, 0.0
        %v629 = vadd.f32 %v627, %v628
        %v630 = vrot.slane %v629, 4
        %v631 = vadd.f32 %v629, %v630
        %v632 = vrot.slane %v631, 2
        %v633 = vadd.f32 %v631, %v632
        %v634 = vrot.slane %v633, 1
        %v635 = vadd.f32 %v633, %v634
        %v636 = vmul.f32 %v635, %v428
        %v637 = vmul.f32 %v534, %v534
        %v638 = vsub.f32 %v636, %v637
        %v639 = vadd.f32 %v638, 1e-05
        %v640 = vrsqrt.pop %v639
        %v641 = vsub.f32 %v387, %v534
        %v642 = vsub.f32 %v388, %v534
        %v643 = vsub.f32 %v389, %v534
        %v644 = vsub.f32 %v390, %v534
        %v645 = vsub.f32 %v391, %v534
        %v646 = vsub.f32 %v392, %v534
        %v647 = vsub.f32 %v393, %v534
        %v648 = vsub.f32 %v394, %v534
        %v649 = vsub.f32 %v395, %v534
        %v650 = vsub.f32 %v396, %v534
        %v651 = vsub.f32 %v397, %v534
        %v652 = vsub.f32 %v398, %v534
        %v653 = vsub.f32 %v399, %v534
        %v654 = vsub.f32 %v400, %v534
        %v655 = vsub.f32 %v401, %v534
        %v656 = vsub.f32 %v402, %v534
        %v657 = vsub.f32 %v403, %v534
        %v658 = vsub.f32 %v404, %v534
        %v659 = vsub.f32 %v405, %v534
        %v660 = vsub.f32 %v406, %v534
        %v661 = vsub.f32 %v407, %v534
        %v662 = vsub.f32 %v408, %v534
        %v663 = vsub.f32 %v409, %v534
        %v664 = vsub.f32 %v410, %v534
        %v665 = vsub.f32 %v411, %v534
        %v666 = vsub.f32 %v412, %v534
        %v667 = vsub.f32 %v413, %v534
        %v668 = vsub.f32 %v414, %v534
        %v669 = vsub.f32 %v415, %v534
        %v670 = vsub.f32 %v416, %v534
        %v671 = vsub.f32 %v417, %v534
        %v672 = vsub.f32 %v418, %v534
        %v673 = vmul.f32 %v641, %v640
        %v674 = vmul.f32 %v642, %v640
        %v675 = vmul.f32 %v643, %v640
        %v676 = vmul.f32 %v644, %v640
        %v677 = vmul.f32 %v645, %v640
        %v678 = vmul.f32 %v646, %v640
        %v679 = vmul.f32 %v647, %v640
        %v680 = vmul.f32 %v648, %v640
        %v681 = vmul.f32 %v649, %v640
        %v682 = vmul.f32 %v650, %v640
        %v683 = vmul.f32 %v651, %v640
        %v684 = vmul.f32 %v652, %v640
        %v685 = vmul.f32 %v653, %v640
        %v686 = vmul.f32 %v654, %v640
        %v687 = vmul.f32 %v655, %v640
        %v688 = vmul.f32 %v656, %v640
        %v689 = vmul.f32 %v657, %v640
        %v690 = vmul.f32 %v658, %v640
        %v691 = vmul.f32 %v659, %v640
        %v692 = vmul.f32 %v660, %v640
        %v693 = vmul.f32 %v661, %v640
        %v694 = vmul.f32 %v662, %v640
        %v695 = vmul.f32 %v663, %v640
        %v696 = vmul.f32 %v664, %v640
        %v697 = vmul.f32 %v665, %v640
        %v698 = vmul.f32 %v666, %v640
        %v699 = vmul.f32 %v667, %v640
        %v700 = vmul.f32 %v668, %v640
        %v701 = vmul.f32 %v669, %v640
        %v702 = vmul.f32 %v670, %v640
        %v703 = vmul.f32 %v671, %v640
        %v704 = vmul.f32 %v672, %v640
        %v706 = vlaneseq
        %v707 = vshrl.u32 %v706, 7
        %v708 = vsub.s32 0, %v707
        %v709 = vrot.slane %v379, %v708
        %v712 = vsel %vm464, %v673, 0
        %v715 = vsel %vm464, %v674, 0
        %v718 = vsel %vm464, %v675, 0
        %v721 = vsel %vm464, %v676, 0
        %v724 = vsel %vm464, %v677, 0
        %v727 = vsel %vm464, %v678, 0
        %v730 = vsel %vm464, %v679, 0
        %v733 = vsel %vm464, %v680, 0
        %v736 = vsel %vm464, %v681, 0
        %v739 = vsel %vm464, %v682, 0
        %v742 = vsel %vm464, %v683, 0
        %v745 = vsel %vm464, %v684, 0
        %v748 = vsel %vm464, %v685, 0
        %v751 = vsel %vm464, %v686, 0
        %v754 = vsel %vm464, %v687, 0
        %v757 = vsel %vm464, %v688, 0
        %v760 = vsel %vm464, %v689, 0
        %v763 = vsel %vm464, %v690, 0
        %v766 = vsel %vm464, %v691, 0
        %v769 = vsel %vm464, %v692, 0
        %v772 = vsel %vm464, %v693, 0
        %v775 = vsel %vm464, %v694, 0
        %v778 = vsel %vm464, %v695, 0
        %v781 = vsel %vm464, %v696, 0
        %v784 = vsel %vm464, %v697, 0
        %v787 = vsel %vm464, %v698, 0
        %v790 = vsel %vm464, %v699, 0
        %v793 = vsel %vm464, %v700, 0
        %v796 = vsel %vm464, %v701, 0
        %v799 = vsel %vm464, %v702, 0
        %v802 = vsel %vm464, %v703, 0
        %v805 = vsel %vm464, %v704, 0
        %v808 = vsel %vm422, %v378, 0
        %810 = vmatprep.subr.mxu0 0.0
        %811 = vmatpush1.msra.mxu0 0.0
        %812 = vmatprep.subr.mxu0 0.0
        %813 = vmatpush1.msra.mxu0 0.0
        %814 = vmatprep.subr.mxu0 0.0
        %815 = vmatpush1.msra.mxu0 0.0
        %816 = vmatprep.subr.mxu0 0.0
        %817 = vmatpush1.msra.mxu0 0.0
        %818 = vmatprep.subr.mxu0 0.0
        %819 = vmatpush1.msra.mxu0 0.0
        %820 = vmatprep.subr.mxu0 0.0
        %821 = vmatpush1.msra.mxu0 0.0
        %822 = vmatprep.subr.mxu0 0.0
        %823 = vmatpush1.msra.mxu0 0.0
        %824 = vmatprep.subr.mxu0 0.0
        %825 = vmatpush1.msra.mxu0 0.0
        %826 = vmatprep.subr.mxu0 0.0
        %827 = vmatpush1.msra.mxu0 0.0
        %828 = vmatprep.subr.mxu0 0.0
        %829 = vmatpush1.msra.mxu0 0.0
        %830 = vmatprep.subr.mxu0 0.0
        %831 = vmatpush1.msra.mxu0 0.0
        %832 = vmatprep.subr.mxu0 0.0
        %833 = vmatpush1.msra.mxu0 0.0
        %834 = vmatprep.subr.mxu0 0.0
        %835 = vmatpush1.msra.mxu0 0.0
        %836 = vmatprep.subr.mxu0 0.0
        %837 = vmatpush1.msra.mxu0 0.0
        %838 = vmatprep.subr.mxu0 0.0
        %839 = vmatpush1.msra.mxu0 0.0
        %840 = vmatprep.subr.mxu0 0.0
        %841 = vmatpush1.msra.mxu0 %v808
        %842 = vmatprep.subr.mxu0 0.0
        %843 = vmatpush2.msra.mxu0 0.0
        %844 = vmatprep.subr.mxu0 0.0
        %845 = vmatpush2.msra.mxu0 0.0
        %846 = vmatprep.subr.mxu0 0.0
        %847 = vmatpush2.msra.mxu0 0.0
        %848 = vmatprep.subr.mxu0 0.0
        %849 = vmatpush2.msra.mxu0 0.0
        %850 = vmatprep.subr.mxu0 0.0
        %851 = vmatpush2.msra.mxu0 0.0
        %852 = vmatprep.subr.mxu0 0.0
        %853 = vmatpush2.msra.mxu0 0.0
        %854 = vmatprep.subr.mxu0 0.0
        %855 = vmatpush2.msra.mxu0 0.0
        %856 = vmatprep.subr.mxu0 0.0
        %857 = vmatpush2.msra.mxu0 0.0
        %858 = vmatprep.subr.mxu0 0.0
        %859 = vmatpush2.msra.mxu0 0.0
        %860 = vmatprep.subr.mxu0 0.0
        %861 = vmatpush2.msra.mxu0 0.0
        %862 = vmatprep.subr.mxu0 0.0
        %863 = vmatpush2.msra.mxu0 0.0
        %864 = vmatprep.subr.mxu0 0.0
        %865 = vmatpush2.msra.mxu0 0.0
        %866 = vmatprep.subr.mxu0 0.0
        %867 = vmatpush2.msra.mxu0 0.0
        %868 = vmatprep.subr.mxu0 0.0
        %869 = vmatpush2.msra.mxu0 0.0
        %870 = vmatprep.subr.mxu0 0.0
        %871 = vmatpush2.msra.mxu0 0.0
        %872 = vmatprep.subr.mxu0 0.0
        %873 = vmatpush2.msra.mxu0 0.0
        %874 = vmatprep.mubr.f32.mxu0 0.0
        %875 = vmatmul.mubr.f32.gmra.mxu0 %v712
        %v876 = vpop.f32.mrf.mxu0
        %v877 = vadd.f32 %v709, %v876
        %v878 = vpop.f32.mrf.mxu0
        %879 = vmatprep.mubr.f32.mxu0 0.0
        %880 = vmatmul.mubr.f32.gmra.mxu0 %v715
        %v881 = vpop.f32.mrf.mxu0
        %v882 = vadd.f32 %v709, %v881
        %v883 = vpop.f32.mrf.mxu0
        %884 = vmatprep.mubr.f32.mxu0 0.0
        %885 = vmatmul.mubr.f32.gmra.mxu0 %v718
        %v886 = vpop.f32.mrf.mxu0
        %v887 = vadd.f32 %v709, %v886
        %v888 = vpop.f32.mrf.mxu0
        %889 = vmatprep.mubr.f32.mxu0 0.0
        %890 = vmatmul.mubr.f32.gmra.mxu0 %v721
        %v891 = vpop.f32.mrf.mxu0
        %v892 = vadd.f32 %v709, %v891
        %v893 = vpop.f32.mrf.mxu0
        %894 = vmatprep.mubr.f32.mxu0 0.0
        %895 = vmatmul.mubr.f32.gmra.mxu0 %v724
        %v896 = vpop.f32.mrf.mxu0
        %v897 = vadd.f32 %v709, %v896
        %v898 = vpop.f32.mrf.mxu0
        %899 = vmatprep.mubr.f32.mxu0 0.0
        %900 = vmatmul.mubr.f32.gmra.mxu0 %v727
        %v901 = vpop.f32.mrf.mxu0
        %v902 = vadd.f32 %v709, %v901
        %v903 = vpop.f32.mrf.mxu0
        %904 = vmatprep.mubr.f32.mxu0 0.0
        %905 = vmatmul.mubr.f32.gmra.mxu0 %v730
        %v906 = vpop.f32.mrf.mxu0
        %v907 = vadd.f32 %v709, %v906
        %v908 = vpop.f32.mrf.mxu0
        %909 = vmatprep.mubr.f32.mxu0 0.0
        %910 = vmatmul.mubr.f32.gmra.mxu0 %v733
        %v911 = vpop.f32.mrf.mxu0
        %v912 = vadd.f32 %v709, %v911
        %v913 = vpop.f32.mrf.mxu0
        %914 = vmatprep.mubr.f32.mxu0 0.0
        %915 = vmatmul.mubr.f32.gmra.mxu0 %v736
        %v916 = vpop.f32.mrf.mxu0
        %v917 = vadd.f32 %v709, %v916
        %v918 = vpop.f32.mrf.mxu0
        %919 = vmatprep.mubr.f32.mxu0 0.0
        %920 = vmatmul.mubr.f32.gmra.mxu0 %v739
        %v921 = vpop.f32.mrf.mxu0
        %v922 = vadd.f32 %v709, %v921
        %v923 = vpop.f32.mrf.mxu0
        %924 = vmatprep.mubr.f32.mxu0 0.0
        %925 = vmatmul.mubr.f32.gmra.mxu0 %v742
        %v926 = vpop.f32.mrf.mxu0
        %v927 = vadd.f32 %v709, %v926
        %v928 = vpop.f32.mrf.mxu0
        %929 = vmatprep.mubr.f32.mxu0 0.0
        %930 = vmatmul.mubr.f32.gmra.mxu0 %v745
        %v931 = vpop.f32.mrf.mxu0
        %v932 = vadd.f32 %v709, %v931
        %v933 = vpop.f32.mrf.mxu0
        %934 = vmatprep.mubr.f32.mxu0 0.0
        %935 = vmatmul.mubr.f32.gmra.mxu0 %v748
        %v936 = vpop.f32.mrf.mxu0
        %v937 = vadd.f32 %v709, %v936
        %v938 = vpop.f32.mrf.mxu0
        %939 = vmatprep.mubr.f32.mxu0 0.0
        %940 = vmatmul.mubr.f32.gmra.mxu0 %v751
        %v941 = vpop.f32.mrf.mxu0
        %v942 = vadd.f32 %v709, %v941
        %v943 = vpop.f32.mrf.mxu0
        %944 = vmatprep.mubr.f32.mxu0 0.0
        %945 = vmatmul.mubr.f32.gmra.mxu0 %v754
        %v946 = vpop.f32.mrf.mxu0
        %v947 = vadd.f32 %v709, %v946
        %v948 = vpop.f32.mrf.mxu0
        %949 = vmatprep.mubr.f32.mxu0 0.0
        %950 = vmatmul.mubr.f32.gmra.mxu0 %v757
        %v951 = vpop.f32.mrf.mxu0
        %v952 = vadd.f32 %v709, %v951
        %v953 = vpop.f32.mrf.mxu0
        %954 = vmatprep.mubr.f32.mxu0 0.0
        %955 = vmatmul.mubr.f32.gmra.mxu0 %v760
        %v956 = vpop.f32.mrf.mxu0
        %v957 = vadd.f32 %v709, %v956
        %v958 = vpop.f32.mrf.mxu0
        %959 = vmatprep.mubr.f32.mxu0 0.0
        %960 = vmatmul.mubr.f32.gmra.mxu0 %v763
        %v961 = vpop.f32.mrf.mxu0
        %v962 = vadd.f32 %v709, %v961
        %v963 = vpop.f32.mrf.mxu0
        %964 = vmatprep.mubr.f32.mxu0 0.0
        %965 = vmatmul.mubr.f32.gmra.mxu0 %v766
        %v966 = vpop.f32.mrf.mxu0
        %v967 = vadd.f32 %v709, %v966
        %v968 = vpop.f32.mrf.mxu0
        %969 = vmatprep.mubr.f32.mxu0 0.0
        %970 = vmatmul.mubr.f32.gmra.mxu0 %v769
        %v971 = vpop.f32.mrf.mxu0
        %v972 = vadd.f32 %v709, %v971
        %v973 = vpop.f32.mrf.mxu0
        %974 = vmatprep.mubr.f32.mxu0 0.0
        %975 = vmatmul.mubr.f32.gmra.mxu0 %v772
        %v976 = vpop.f32.mrf.mxu0
        %v977 = vadd.f32 %v709, %v976
        %v978 = vpop.f32.mrf.mxu0
        %979 = vmatprep.mubr.f32.mxu0 0.0
        %980 = vmatmul.mubr.f32.gmra.mxu0 %v775
        %v981 = vpop.f32.mrf.mxu0
        %v982 = vadd.f32 %v709, %v981
        %v983 = vpop.f32.mrf.mxu0
        %984 = vmatprep.mubr.f32.mxu0 0.0
        %985 = vmatmul.mubr.f32.gmra.mxu0 %v778
        %v986 = vpop.f32.mrf.mxu0
        %v987 = vadd.f32 %v709, %v986
        %v988 = vpop.f32.mrf.mxu0
        %989 = vmatprep.mubr.f32.mxu0 0.0
        %990 = vmatmul.mubr.f32.gmra.mxu0 %v781
        %v991 = vpop.f32.mrf.mxu0
        %v992 = vadd.f32 %v709, %v991
        %v993 = vpop.f32.mrf.mxu0
        %994 = vmatprep.mubr.f32.mxu0 0.0
        %995 = vmatmul.mubr.f32.gmra.mxu0 %v784
        %v996 = vpop.f32.mrf.mxu0
        %v997 = vadd.f32 %v709, %v996
        %v998 = vpop.f32.mrf.mxu0
        %999 = vmatprep.mubr.f32.mxu0 0.0
        %1000 = vmatmul.mubr.f32.gmra.mxu0 %v787
        %v1001 = vpop.f32.mrf.mxu0
        %v1002 = vadd.f32 %v709, %v1001
        %v1003 = vpop.f32.mrf.mxu0
        %1004 = vmatprep.mubr.f32.mxu0 0.0
        %1005 = vmatmul.mubr.f32.gmra.mxu0 %v790
        %v1006 = vpop.f32.mrf.mxu0
        %v1007 = vadd.f32 %v709, %v1006
        %v1008 = vpop.f32.mrf.mxu0
        %1009 = vmatprep.mubr.f32.mxu0 0.0
        %1010 = vmatmul.mubr.f32.gmra.mxu0 %v793
        %v1011 = vpop.f32.mrf.mxu0
        %v1012 = vadd.f32 %v709, %v1011
        %v1013 = vpop.f32.mrf.mxu0
        %1014 = vmatprep.mubr.f32.mxu0 0.0
        %1015 = vmatmul.mubr.f32.gmra.mxu0 %v796
        %v1016 = vpop.f32.mrf.mxu0
        %v1017 = vadd.f32 %v709, %v1016
        %v1018 = vpop.f32.mrf.mxu0
        %1019 = vmatprep.mubr.f32.mxu0 0.0
        %1020 = vmatmul.mubr.f32.gmra.mxu0 %v799
        %v1021 = vpop.f32.mrf.mxu0
        %v1022 = vadd.f32 %v709, %v1021
        %v1023 = vpop.f32.mrf.mxu0
        %1024 = vmatprep.mubr.f32.mxu0 0.0
        %1025 = vmatmul.mubr.f32.gmra.mxu0 %v802
        %v1026 = vpop.f32.mrf.mxu0
        %v1027 = vadd.f32 %v709, %v1026
        %v1028 = vpop.f32.mrf.mxu0
        %1029 = vmatprep.mubr.f32.mxu0 0.0
        %1030 = vmatmul.mubr.f32.gmra.mxu0 %v805
        %v1031 = vpop.f32.mrf.mxu0
        %v1032 = vadd.f32 %v709, %v1031
        %v1033 = vpop.f32.mrf.mxu0
        %1034 = vdwg.mxu0
        %1036 = vset.pattern.permute.xlu0 0
        %1037 = vperm.xlu0 %1036, %v381
        %v1038 = vpop.permute.xlu0 %1037
        %v1041 = vcombine.high %v463, %v463
        %v1043 = vsel %vm464, %v380, 0
        %v1045 = vsel %vm422, %v463, 0
        %v1047 = vsel %vm422, %v1041, 0
        %1049 = vmatprep.subr.mxu0 0.0
        %1050 = vmatpush1.msra.mxu0 0.0
        %1051 = vmatprep.subr.mxu0 0.0
        %1052 = vmatpush1.msra.mxu0 0.0
        %1053 = vmatprep.subr.mxu0 0.0
        %1054 = vmatpush1.msra.mxu0 0.0
        %1055 = vmatprep.subr.mxu0 0.0
        %1056 = vmatpush1.msra.mxu0 0.0
        %1057 = vmatprep.subr.mxu0 0.0
        %1058 = vmatpush1.msra.mxu0 0.0
        %1059 = vmatprep.subr.mxu0 0.0
        %1060 = vmatpush1.msra.mxu0 0.0
        %1061 = vmatprep.subr.mxu0 0.0
        %1062 = vmatpush1.msra.mxu0 0.0
        %1063 = vmatprep.subr.mxu0 0.0
        %1064 = vmatpush1.msra.mxu0 0.0
        %1065 = vmatprep.subr.mxu0 0.0
        %1066 = vmatpush1.msra.mxu0 0.0
        %1067 = vmatprep.subr.mxu0 0.0
        %1068 = vmatpush1.msra.mxu0 0.0
        %1069 = vmatprep.subr.mxu0 0.0
        %1070 = vmatpush1.msra.mxu0 0.0
        %1071 = vmatprep.subr.mxu0 0.0
        %1072 = vmatpush1.msra.mxu0 0.0
        %1073 = vmatprep.subr.mxu0 0.0
        %1074 = vmatpush1.msra.mxu0 0.0
        %1075 = vmatprep.subr.mxu0 0.0
        %1076 = vmatpush1.msra.mxu0 0.0
        %1077 = vmatprep.subr.mxu0 0.0
        %1078 = vmatpush1.msra.mxu0 0.0
        %1079 = vmatprep.subr.mxu0 %v1047
        %1080 = vmatpush1.msra.mxu0 %v1045
        %1081 = vmatprep.subr.mxu0 0.0
        %1082 = vmatpush2.msra.mxu0 0.0
        %1083 = vmatprep.subr.mxu0 0.0
        %1084 = vmatpush2.msra.mxu0 0.0
        %1085 = vmatprep.subr.mxu0 0.0
        %1086 = vmatpush2.msra.mxu0 0.0
        %1087 = vmatprep.subr.mxu0 0.0
        %1088 = vmatpush2.msra.mxu0 0.0
        %1089 = vmatprep.subr.mxu0 0.0
        %1090 = vmatpush2.msra.mxu0 0.0
        %1091 = vmatprep.subr.mxu0 0.0
        %1092 = vmatpush2.msra.mxu0 0.0
        %1093 = vmatprep.subr.mxu0 0.0
        %1094 = vmatpush2.msra.mxu0 0.0
        %1095 = vmatprep.subr.mxu0 0.0
        %1096 = vmatpush2.msra.mxu0 0.0
        %1097 = vmatprep.subr.mxu0 0.0
        %1098 = vmatpush2.msra.mxu0 0.0
        %1099 = vmatprep.subr.mxu0 0.0
        %1100 = vmatpush2.msra.mxu0 0.0
        %1101 = vmatprep.subr.mxu0 0.0
        %1102 = vmatpush2.msra.mxu0 0.0
        %1103 = vmatprep.subr.mxu0 0.0
        %1104 = vmatpush2.msra.mxu0 0.0
        %1105 = vmatprep.subr.mxu0 0.0
        %1106 = vmatpush2.msra.mxu0 0.0
        %1107 = vmatprep.subr.mxu0 0.0
        %1108 = vmatpush2.msra.mxu0 0.0
        %1109 = vmatprep.subr.mxu0 0.0
        %1110 = vmatpush2.msra.mxu0 0.0
        %1111 = vmatprep.subr.mxu0 0.0
        %1112 = vmatpush2.msra.mxu0 0.0
        %1113 = vmatprep.mubr.f32.mxu0 0.0
        %1114 = vmatmul.mubr.f32.gmra.mxu0 %v1043
        %v1115 = vpop.f32.mrf.mxu0
        %v1116 = vadd.f32 %v1038, %v1115
        %v1117 = vpop.f32.mrf.mxu0
        %v1118 = vadd.f32 %v1038, %v1117
        %1119 = vdwg.mxu0
        %1121 = vset.pattern.permute.xlu0 0
        %1122 = vperm.xlu0 %1121, %v383
        %v1123 = vpop.permute.xlu0 %1122
        %v1126 = vsel %vm464, %v382, 0
        %1128 = vmatprep.subr.mxu0 0.0
        %1129 = vmatpush1.msra.mxu0 0.0
        %1130 = vmatprep.subr.mxu0 0.0
        %1131 = vmatpush1.msra.mxu0 0.0
        %1132 = vmatprep.subr.mxu0 0.0
        %1133 = vmatpush1.msra.mxu0 0.0
        %1134 = vmatprep.subr.mxu0 0.0
        %1135 = vmatpush1.msra.mxu0 0.0
        %1136 = vmatprep.subr.mxu0 0.0
        %1137 = vmatpush1.msra.mxu0 0.0
        %1138 = vmatprep.subr.mxu0 0.0
        %1139 = vmatpush1.msra.mxu0 0.0
        %1140 = vmatprep.subr.mxu0 0.0
        %1141 = vmatpush1.msra.mxu0 0.0
        %1142 = vmatprep.subr.mxu0 0.0
        %1143 = vmatpush1.msra.mxu0 0.0
        %1144 = vmatprep.subr.mxu0 0.0
        %1145 = vmatpush1.msra.mxu0 0.0
        %1146 = vmatprep.subr.mxu0 0.0
        %1147 = vmatpush1.msra.mxu0 0.0
        %1148 = vmatprep.subr.mxu0 0.0
        %1149 = vmatpush1.msra.mxu0 0.0
        %1150 = vmatprep.subr.mxu0 0.0
        %1151 = vmatpush1.msra.mxu0 0.0
        %1152 = vmatprep.subr.mxu0 0.0
        %1153 = vmatpush1.msra.mxu0 0.0
        %1154 = vmatprep.subr.mxu0 0.0
        %1155 = vmatpush1.msra.mxu0 0.0
        %1156 = vmatprep.subr.mxu0 0.0
        %1157 = vmatpush1.msra.mxu0 0.0
        %1158 = vmatprep.subr.mxu0 %v1047
        %1159 = vmatpush1.msra.mxu0 %v1045
        %1160 = vmatprep.subr.mxu0 0.0
        %1161 = vmatpush2.msra.mxu0 0.0
        %1162 = vmatprep.subr.mxu0 0.0
        %1163 = vmatpush2.msra.mxu0 0.0
        %1164 = vmatprep.subr.mxu0 0.0
        %1165 = vmatpush2.msra.mxu0 0.0
        %1166 = vmatprep.subr.mxu0 0.0
        %1167 = vmatpush2.msra.mxu0 0.0
        %1168 = vmatprep.subr.mxu0 0.0
        %1169 = vmatpush2.msra.mxu0 0.0
        %1170 = vmatprep.subr.mxu0 0.0
        %1171 = vmatpush2.msra.mxu0 0.0
        %1172 = vmatprep.subr.mxu0 0.0
        %1173 = vmatpush2.msra.mxu0 0.0
        %1174 = vmatprep.subr.mxu0 0.0
        %1175 = vmatpush2.msra.mxu0 0.0
        %1176 = vmatprep.subr.mxu0 0.0
        %1177 = vmatpush2.msra.mxu0 0.0
        %1178 = vmatprep.subr.mxu0 0.0
        %1179 = vmatpush2.msra.mxu0 0.0
        %1180 = vmatprep.subr.mxu0 0.0
        %1181 = vmatpush2.msra.mxu0 0.0
        %1182 = vmatprep.subr.mxu0 0.0
        %1183 = vmatpush2.msra.mxu0 0.0
        %1184 = vmatprep.subr.mxu0 0.0
        %1185 = vmatpush2.msra.mxu0 0.0
        %1186 = vmatprep.subr.mxu0 0.0
        %1187 = vmatpush2.msra.mxu0 0.0
        %1188 = vmatprep.subr.mxu0 0.0
        %1189 = vmatpush2.msra.mxu0 0.0
        %1190 = vmatprep.subr.mxu0 0.0
        %1191 = vmatpush2.msra.mxu0 0.0
        %1192 = vmatprep.mubr.f32.mxu0 0.0
        %1193 = vmatmul.mubr.f32.gmra.mxu0 %v1126
        %v1194 = vpop.f32.mrf.mxu0
        %v1195 = vadd.f32 %v1123, %v1194
        %v1196 = vpop.f32.mrf.mxu0
        %v1197 = vadd.f32 %v1123, %v1196
        %1198 = vdwg.mxu0
        %v1200 = vsel %vm464, %v877, 0
        %v1203 = vsel %vm464, %v882, 0
        %v1206 = vsel %vm464, %v887, 0
        %v1209 = vsel %vm464, %v892, 0
        %v1212 = vsel %vm464, %v897, 0
        %v1215 = vsel %vm464, %v902, 0
        %v1218 = vsel %vm464, %v907, 0
        %v1221 = vsel %vm464, %v912, 0
        %v1224 = vsel %vm464, %v917, 0
        %v1227 = vsel %vm464, %v922, 0
        %v1230 = vsel %vm464, %v927, 0
        %v1233 = vsel %vm464, %v932, 0
        %v1236 = vsel %vm464, %v937, 0
        %v1239 = vsel %vm464, %v942, 0
        %v1242 = vsel %vm464, %v947, 0
        %v1245 = vsel %vm464, %v952, 0
        %v1248 = vsel %vm464, %v957, 0
        %v1251 = vsel %vm464, %v962, 0
        %v1254 = vsel %vm464, %v967, 0
        %v1257 = vsel %vm464, %v972, 0
        %v1260 = vsel %vm464, %v977, 0
        %v1263 = vsel %vm464, %v982, 0
        %v1266 = vsel %vm464, %v987, 0
        %v1269 = vsel %vm464, %v992, 0
        %v1272 = vsel %vm464, %v997, 0
        %v1275 = vsel %vm464, %v1002, 0
        %v1278 = vsel %vm464, %v1007, 0
        %v1281 = vsel %vm464, %v1012, 0
        %v1284 = vsel %vm464, %v1017, 0
        %v1287 = vsel %vm464, %v1022, 0
        %v1290 = vsel %vm464, %v1027, 0
        %v1293 = vsel %vm464, %v1032, 0
        %v1296 = vsel %vm422, %v1116, 0
        %v1299 = vsel %vm422, %v1118, 0
        %1301 = vmatprep.subr.mxu0 0.0
        %1302 = vmatpush1.msra.mxu0 0.0
        %1303 = vmatprep.subr.mxu0 0.0
        %1304 = vmatpush1.msra.mxu0 0.0
        %1305 = vmatprep.subr.mxu0 0.0
        %1306 = vmatpush1.msra.mxu0 0.0
        %1307 = vmatprep.subr.mxu0 0.0
        %1308 = vmatpush1.msra.mxu0 0.0
        %1309 = vmatprep.subr.mxu0 0.0
        %1310 = vmatpush1.msra.mxu0 0.0
        %1311 = vmatprep.subr.mxu0 0.0
        %1312 = vmatpush1.msra.mxu0 0.0
        %1313 = vmatprep.subr.mxu0 0.0
        %1314 = vmatpush1.msra.mxu0 0.0
        %1315 = vmatprep.subr.mxu0 0.0
        %1316 = vmatpush1.msra.mxu0 0.0
        %1317 = vmatprep.subr.mxu0 0.0
        %1318 = vmatpush1.msra.mxu0 0.0
        %1319 = vmatprep.subr.mxu0 0.0
        %1320 = vmatpush1.msra.mxu0 0.0
        %1321 = vmatprep.subr.mxu0 0.0
        %1322 = vmatpush1.msra.mxu0 0.0
        %1323 = vmatprep.subr.mxu0 0.0
        %1324 = vmatpush1.msra.mxu0 0.0
        %1325 = vmatprep.subr.mxu0 0.0
        %1326 = vmatpush1.msra.mxu0 0.0
        %1327 = vmatprep.subr.mxu0 0.0
        %1328 = vmatpush1.msra.mxu0 0.0
        %1329 = vmatprep.subr.mxu0 0.0
        %1330 = vmatpush1.msra.mxu0 0.0
        %1331 = vmatprep.subr.mxu0 %v1299
        %1332 = vmatpush1.msra.mxu0 %v1296
        %1333 = vmatprep.subr.mxu0 0.0
        %1334 = vmatpush2.msra.mxu0 0.0
        %1335 = vmatprep.subr.mxu0 0.0
        %1336 = vmatpush2.msra.mxu0 0.0
        %1337 = vmatprep.subr.mxu0 0.0
        %1338 = vmatpush2.msra.mxu0 0.0
        %1339 = vmatprep.subr.mxu0 0.0
        %1340 = vmatpush2.msra.mxu0 0.0
        %1341 = vmatprep.subr.mxu0 0.0
        %1342 = vmatpush2.msra.mxu0 0.0
        %1343 = vmatprep.subr.mxu0 0.0
        %1344 = vmatpush2.msra.mxu0 0.0
        %1345 = vmatprep.subr.mxu0 0.0
        %1346 = vmatpush2.msra.mxu0 0.0
        %1347 = vmatprep.subr.mxu0 0.0
        %1348 = vmatpush2.msra.mxu0 0.0
        %1349 = vmatprep.subr.mxu0 0.0
        %1350 = vmatpush2.msra.mxu0 0.0
        %1351 = vmatprep.subr.mxu0 0.0
        %1352 = vmatpush2.msra.mxu0 0.0
        %1353 = vmatprep.subr.mxu0 0.0
        %1354 = vmatpush2.msra.mxu0 0.0
        %1355 = vmatprep.subr.mxu0 0.0
        %1356 = vmatpush2.msra.mxu0 0.0
        %1357 = vmatprep.subr.mxu0 0.0
        %1358 = vmatpush2.msra.mxu0 0.0
        %1359 = vmatprep.subr.mxu0 0.0
        %1360 = vmatpush2.msra.mxu0 0.0
        %1361 = vmatprep.subr.mxu0 0.0
        %1362 = vmatpush2.msra.mxu0 0.0
        %1363 = vmatprep.subr.mxu0 0.0
        %1364 = vmatpush2.msra.mxu0 0.0
        %1365 = vmatprep.mubr.f32.mxu0 0.0
        %1366 = vmatmul.mubr.f32.gmra.mxu0 %v1200
        %v1367 = vpop.f32.mrf.mxu0
        %v1368 = vadd.f32 0.0, %v1367
        %v1369 = vpop.f32.mrf.mxu0
        %v1370 = vadd.f32 0.0, %v1369
        %1371 = vmatprep.mubr.f32.mxu0 0.0
        %1372 = vmatmul.mubr.f32.gmra.mxu0 %v1203
        %v1373 = vpop.f32.mrf.mxu0
        %v1374 = vadd.f32 0.0, %v1373
        %v1375 = vpop.f32.mrf.mxu0
        %v1376 = vadd.f32 0.0, %v1375
        %1377 = vmatprep.mubr.f32.mxu0 0.0
        %1378 = vmatmul.mubr.f32.gmra.mxu0 %v1206
        %v1379 = vpop.f32.mrf.mxu0
        %v1380 = vadd.f32 0.0, %v1379
        %v1381 = vpop.f32.mrf.mxu0
        %v1382 = vadd.f32 0.0, %v1381
        %1383 = vmatprep.mubr.f32.mxu0 0.0
        %1384 = vmatmul.mubr.f32.gmra.mxu0 %v1209
        %v1385 = vpop.f32.mrf.mxu0
        %v1386 = vadd.f32 0.0, %v1385
        %v1387 = vpop.f32.mrf.mxu0
        %v1388 = vadd.f32 0.0, %v1387
        %1389 = vmatprep.mubr.f32.mxu0 0.0
        %1390 = vmatmul.mubr.f32.gmra.mxu0 %v1212
        %v1391 = vpop.f32.mrf.mxu0
        %v1392 = vadd.f32 0.0, %v1391
        %v1393 = vpop.f32.mrf.mxu0
        %v1394 = vadd.f32 0.0, %v1393
        %1395 = vmatprep.mubr.f32.mxu0 0.0
        %1396 = vmatmul.mubr.f32.gmra.mxu0 %v1215
        %v1397 = vpop.f32.mrf.mxu0
        %v1398 = vadd.f32 0.0, %v1397
        %v1399 = vpop.f32.mrf.mxu0
        %v1400 = vadd.f32 0.0, %v1399
        %1401 = vmatprep.mubr.f32.mxu0 0.0
        %1402 = vmatmul.mubr.f32.gmra.mxu0 %v1218
        %v1403 = vpop.f32.mrf.mxu0
        %v1404 = vadd.f32 0.0, %v1403
        %v1405 = vpop.f32.mrf.mxu0
        %v1406 = vadd.f32 0.0, %v1405
        %1407 = vmatprep.mubr.f32.mxu0 0.0
        %1408 = vmatmul.mubr.f32.gmra.mxu0 %v1221
        %v1409 = vpop.f32.mrf.mxu0
        %v1410 = vadd.f32 0.0, %v1409
        %v1411 = vpop.f32.mrf.mxu0
        %v1412 = vadd.f32 0.0, %v1411
        %1413 = vmatprep.mubr.f32.mxu0 0.0
        %1414 = vmatmul.mubr.f32.gmra.mxu0 %v1224
        %v1415 = vpop.f32.mrf.mxu0
        %v1416 = vadd.f32 0.0, %v1415
        %v1417 = vpop.f32.mrf.mxu0
        %v1418 = vadd.f32 0.0, %v1417
        %1419 = vmatprep.mubr.f32.mxu0 0.0
        %1420 = vmatmul.mubr.f32.gmra.mxu0 %v1227
        %v1421 = vpop.f32.mrf.mxu0
        %v1422 = vadd.f32 0.0, %v1421
        %v1423 = vpop.f32.mrf.mxu0
        %v1424 = vadd.f32 0.0, %v1423
        %1425 = vmatprep.mubr.f32.mxu0 0.0
        %1426 = vmatmul.mubr.f32.gmra.mxu0 %v1230
        %v1427 = vpop.f32.mrf.mxu0
        %v1428 = vadd.f32 0.0, %v1427
        %v1429 = vpop.f32.mrf.mxu0
        %v1430 = vadd.f32 0.0, %v1429
        %1431 = vmatprep.mubr.f32.mxu0 0.0
        %1432 = vmatmul.mubr.f32.gmra.mxu0 %v1233
        %v1433 = vpop.f32.mrf.mxu0
        %v1434 = vadd.f32 0.0, %v1433
        %v1435 = vpop.f32.mrf.mxu0
        %v1436 = vadd.f32 0.0, %v1435
        %1437 = vmatprep.mubr.f32.mxu0 0.0
        %1438 = vmatmul.mubr.f32.gmra.mxu0 %v1236
        %v1439 = vpop.f32.mrf.mxu0
        %v1440 = vadd.f32 0.0, %v1439
        %v1441 = vpop.f32.mrf.mxu0
        %v1442 = vadd.f32 0.0, %v1441
        %1443 = vmatprep.mubr.f32.mxu0 0.0
        %1444 = vmatmul.mubr.f32.gmra.mxu0 %v1239
        %v1445 = vpop.f32.mrf.mxu0
        %v1446 = vadd.f32 0.0, %v1445
        %v1447 = vpop.f32.mrf.mxu0
        %v1448 = vadd.f32 0.0, %v1447
        %1449 = vmatprep.mubr.f32.mxu0 0.0
        %1450 = vmatmul.mubr.f32.gmra.mxu0 %v1242
        %v1451 = vpop.f32.mrf.mxu0
        %v1452 = vadd.f32 0.0, %v1451
        %v1453 = vpop.f32.mrf.mxu0
        %v1454 = vadd.f32 0.0, %v1453
        %1455 = vmatprep.mubr.f32.mxu0 0.0
        %1456 = vmatmul.mubr.f32.gmra.mxu0 %v1245
        %v1457 = vpop.f32.mrf.mxu0
        %v1458 = vadd.f32 0.0, %v1457
        %v1459 = vpop.f32.mrf.mxu0
        %v1460 = vadd.f32 0.0, %v1459
        %1461 = vmatprep.mubr.f32.mxu0 0.0
        %1462 = vmatmul.mubr.f32.gmra.mxu0 %v1248
        %v1463 = vpop.f32.mrf.mxu0
        %v1464 = vadd.f32 0.0, %v1463
        %v1465 = vpop.f32.mrf.mxu0
        %v1466 = vadd.f32 0.0, %v1465
        %1467 = vmatprep.mubr.f32.mxu0 0.0
        %1468 = vmatmul.mubr.f32.gmra.mxu0 %v1251
        %v1469 = vpop.f32.mrf.mxu0
        %v1470 = vadd.f32 0.0, %v1469
        %v1471 = vpop.f32.mrf.mxu0
        %v1472 = vadd.f32 0.0, %v1471
        %1473 = vmatprep.mubr.f32.mxu0 0.0
        %1474 = vmatmul.mubr.f32.gmra.mxu0 %v1254
        %v1475 = vpop.f32.mrf.mxu0
        %v1476 = vadd.f32 0.0, %v1475
        %v1477 = vpop.f32.mrf.mxu0
        %v1478 = vadd.f32 0.0, %v1477
        %1479 = vmatprep.mubr.f32.mxu0 0.0
        %1480 = vmatmul.mubr.f32.gmra.mxu0 %v1257
        %v1481 = vpop.f32.mrf.mxu0
        %v1482 = vadd.f32 0.0, %v1481
        %v1483 = vpop.f32.mrf.mxu0
        %v1484 = vadd.f32 0.0, %v1483
        %1485 = vmatprep.mubr.f32.mxu0 0.0
        %1486 = vmatmul.mubr.f32.gmra.mxu0 %v1260
        %v1487 = vpop.f32.mrf.mxu0
        %v1488 = vadd.f32 0.0, %v1487
        %v1489 = vpop.f32.mrf.mxu0
        %v1490 = vadd.f32 0.0, %v1489
        %1491 = vmatprep.mubr.f32.mxu0 0.0
        %1492 = vmatmul.mubr.f32.gmra.mxu0 %v1263
        %v1493 = vpop.f32.mrf.mxu0
        %v1494 = vadd.f32 0.0, %v1493
        %v1495 = vpop.f32.mrf.mxu0
        %v1496 = vadd.f32 0.0, %v1495
        %1497 = vmatprep.mubr.f32.mxu0 0.0
        %1498 = vmatmul.mubr.f32.gmra.mxu0 %v1266
        %v1499 = vpop.f32.mrf.mxu0
        %v1500 = vadd.f32 0.0, %v1499
        %v1501 = vpop.f32.mrf.mxu0
        %v1502 = vadd.f32 0.0, %v1501
        %1503 = vmatprep.mubr.f32.mxu0 0.0
        %1504 = vmatmul.mubr.f32.gmra.mxu0 %v1269
        %v1505 = vpop.f32.mrf.mxu0
        %v1506 = vadd.f32 0.0, %v1505
        %v1507 = vpop.f32.mrf.mxu0
        %v1508 = vadd.f32 0.0, %v1507
        %1509 = vmatprep.mubr.f32.mxu0 0.0
        %1510 = vmatmul.mubr.f32.gmra.mxu0 %v1272
        %v1511 = vpop.f32.mrf.mxu0
        %v1512 = vadd.f32 0.0, %v1511
        %v1513 = vpop.f32.mrf.mxu0
        %v1514 = vadd.f32 0.0, %v1513
        %1515 = vmatprep.mubr.f32.mxu0 0.0
        %1516 = vmatmul.mubr.f32.gmra.mxu0 %v1275
        %v1517 = vpop.f32.mrf.mxu0
        %v1518 = vadd.f32 0.0, %v1517
        %v1519 = vpop.f32.mrf.mxu0
        %v1520 = vadd.f32 0.0, %v1519
        %1521 = vmatprep.mubr.f32.mxu0 0.0
        %1522 = vmatmul.mubr.f32.gmra.mxu0 %v1278
        %v1523 = vpop.f32.mrf.mxu0
        %v1524 = vadd.f32 0.0, %v1523
        %v1525 = vpop.f32.mrf.mxu0
        %v1526 = vadd.f32 0.0, %v1525
        %1527 = vmatprep.mubr.f32.mxu0 0.0
        %1528 = vmatmul.mubr.f32.gmra.mxu0 %v1281
        %v1529 = vpop.f32.mrf.mxu0
        %v1530 = vadd.f32 0.0, %v1529
        %v1531 = vpop.f32.mrf.mxu0
        %v1532 = vadd.f32 0.0, %v1531
        %1533 = vmatprep.mubr.f32.mxu0 0.0
        %1534 = vmatmul.mubr.f32.gmra.mxu0 %v1284
        %v1535 = vpop.f32.mrf.mxu0
        %v1536 = vadd.f32 0.0, %v1535
        %v1537 = vpop.f32.mrf.mxu0
        %v1538 = vadd.f32 0.0, %v1537
        %1539 = vmatprep.mubr.f32.mxu0 0.0
        %1540 = vmatmul.mubr.f32.gmra.mxu0 %v1287
        %v1541 = vpop.f32.mrf.mxu0
        %v1542 = vadd.f32 0.0, %v1541
        %v1543 = vpop.f32.mrf.mxu0
        %v1544 = vadd.f32 0.0, %v1543
        %1545 = vmatprep.mubr.f32.mxu0 0.0
        %1546 = vmatmul.mubr.f32.gmra.mxu0 %v1290
        %v1547 = vpop.f32.mrf.mxu0
        %v1548 = vadd.f32 0.0, %v1547
        %v1549 = vpop.f32.mrf.mxu0
        %v1550 = vadd.f32 0.0, %v1549
        %1551 = vmatprep.mubr.f32.mxu0 0.0
        %1552 = vmatmul.mubr.f32.gmra.mxu0 %v1293
        %v1553 = vpop.f32.mrf.mxu0
        %v1554 = vadd.f32 0.0, %v1553
        %v1555 = vpop.f32.mrf.mxu0
        %v1556 = vadd.f32 0.0, %v1555
        %1557 = vdwg.mxu0
        %v1558 = vmax.f32 %v1368, %v1370
        %1559 = vmax.xlane.f32.xlu0 %v1558
        %v1560 = vpop.xlane.xlu0 %1559
        %v1561 = vmax.f32 %v1374, %v1376
        %1562 = vmax.xlane.f32.xlu0 %v1561
        %v1563 = vpop.xlane.xlu0 %1562
        %v1564 = vmax.f32 %v1380, %v1382
        %1565 = vmax.xlane.f32.xlu0 %v1564
        %v1566 = vpop.xlane.xlu0 %1565
        %v1567 = vmax.f32 %v1386, %v1388
        %1568 = vmax.xlane.f32.xlu0 %v1567
        %v1569 = vpop.xlane.xlu0 %1568
        %v1570 = vmax.f32 %v1392, %v1394
        %1571 = vmax.xlane.f32.xlu0 %v1570
        %v1572 = vpop.xlane.xlu0 %1571
        %v1573 = vmax.f32 %v1398, %v1400
        %1574 = vmax.xlane.f32.xlu0 %v1573
        %v1575 = vpop.xlane.xlu0 %1574
        %v1576 = vmax.f32 %v1404, %v1406
        %1577 = vmax.xlane.f32.xlu0 %v1576
        %v1578 = vpop.xlane.xlu0 %1577
        %v1579 = vmax.f32 %v1410, %v1412
        %1580 = vmax.xlane.f32.xlu0 %v1579
        %v1581 = vpop.xlane.xlu0 %1580
        %v1582 = vmax.f32 %v1416, %v1418
        %1583 = vmax.xlane.f32.xlu0 %v1582
        %v1584 = vpop.xlane.xlu0 %1583
        %v1585 = vmax.f32 %v1422, %v1424
        %1586 = vmax.xlane.f32.xlu0 %v1585
        %v1587 = vpop.xlane.xlu0 %1586
        %v1588 = vmax.f32 %v1428, %v1430
        %1589 = vmax.xlane.f32.xlu0 %v1588
        %v1590 = vpop.xlane.xlu0 %1589
        %v1591 = vmax.f32 %v1434, %v1436
        %1592 = vmax.xlane.f32.xlu0 %v1591
        %v1593 = vpop.xlane.xlu0 %1592
        %v1594 = vmax.f32 %v1440, %v1442
        %1595 = vmax.xlane.f32.xlu0 %v1594
        %v1596 = vpop.xlane.xlu0 %1595
        %v1597 = vmax.f32 %v1446, %v1448
        %1598 = vmax.xlane.f32.xlu0 %v1597
        %v1599 = vpop.xlane.xlu0 %1598
        %v1600 = vmax.f32 %v1452, %v1454
        %1601 = vmax.xlane.f32.xlu0 %v1600
        %v1602 = vpop.xlane.xlu0 %1601
        %v1603 = vmax.f32 %v1458, %v1460
        %1604 = vmax.xlane.f32.xlu0 %v1603
        %v1605 = vpop.xlane.xlu0 %1604
        %v1606 = vmax.f32 %v1464, %v1466
        %1607 = vmax.xlane.f32.xlu0 %v1606
        %v1608 = vpop.xlane.xlu0 %1607
        %v1609 = vmax.f32 %v1470, %v1472
        %1610 = vmax.xlane.f32.xlu0 %v1609
        %v1611 = vpop.xlane.xlu0 %1610
        %v1612 = vmax.f32 %v1476, %v1478
        %1613 = vmax.xlane.f32.xlu0 %v1612
        %v1614 = vpop.xlane.xlu0 %1613
        %v1615 = vmax.f32 %v1482, %v1484
        %1616 = vmax.xlane.f32.xlu0 %v1615
        %v1617 = vpop.xlane.xlu0 %1616
        %v1618 = vmax.f32 %v1488, %v1490
        %1619 = vmax.xlane.f32.xlu0 %v1618
        %v1620 = vpop.xlane.xlu0 %1619
        %v1621 = vmax.f32 %v1494, %v1496
        %1622 = vmax.xlane.f32.xlu0 %v1621
        %v1623 = vpop.xlane.xlu0 %1622
        %v1624 = vmax.f32 %v1500, %v1502
        %1625 = vmax.xlane.f32.xlu0 %v1624
        %v1626 = vpop.xlane.xlu0 %1625
        %v1627 = vmax.f32 %v1506, %v1508
        %1628 = vmax.xlane.f32.xlu0 %v1627
        %v1629 = vpop.xlane.xlu0 %1628
        %v1630 = vmax.f32 %v1512, %v1514
        %1631 = vmax.xlane.f32.xlu0 %v1630
        %v1632 = vpop.xlane.xlu0 %1631
        %v1633 = vmax.f32 %v1518, %v1520
        %1634 = vmax.xlane.f32.xlu0 %v1633
        %v1635 = vpop.xlane.xlu0 %1634
        %v1636 = vmax.f32 %v1524, %v1526
        %1637 = vmax.xlane.f32.xlu0 %v1636
        %v1638 = vpop.xlane.xlu0 %1637
        %v1639 = vmax.f32 %v1530, %v1532
        %1640 = vmax.xlane.f32.xlu0 %v1639
        %v1641 = vpop.xlane.xlu0 %1640
        %v1642 = vmax.f32 %v1536, %v1538
        %1643 = vmax.xlane.f32.xlu0 %v1642
        %v1644 = vpop.xlane.xlu0 %1643
        %v1645 = vmax.f32 %v1542, %v1544
        %1646 = vmax.xlane.f32.xlu0 %v1645
        %v1647 = vpop.xlane.xlu0 %1646
        %v1648 = vmax.f32 %v1548, %v1550
        %1649 = vmax.xlane.f32.xlu0 %v1648
        %v1650 = vpop.xlane.xlu0 %1649
        %v1651 = vmax.f32 %v1554, %v1556
        %1652 = vmax.xlane.f32.xlu0 %v1651
        %v1653 = vpop.xlane.xlu0 %1652
        %v1654 = vsub.f32 %v1368, %v1560
        %v1655 = vsub.f32 %v1370, %v1560
        %v1656 = vsub.f32 %v1374, %v1563
        %v1657 = vsub.f32 %v1376, %v1563
        %v1658 = vsub.f32 %v1380, %v1566
        %v1659 = vsub.f32 %v1382, %v1566
        %v1660 = vsub.f32 %v1386, %v1569
        %v1661 = vsub.f32 %v1388, %v1569
        %v1662 = vsub.f32 %v1392, %v1572
        %v1663 = vsub.f32 %v1394, %v1572
        %v1664 = vsub.f32 %v1398, %v1575
        %v1665 = vsub.f32 %v1400, %v1575
        %v1666 = vsub.f32 %v1404, %v1578
        %v1667 = vsub.f32 %v1406, %v1578
        %v1668 = vsub.f32 %v1410, %v1581
        %v1669 = vsub.f32 %v1412, %v1581
        %v1670 = vsub.f32 %v1416, %v1584
        %v1671 = vsub.f32 %v1418, %v1584
        %v1672 = vsub.f32 %v1422, %v1587
        %v1673 = vsub.f32 %v1424, %v1587
        %v1674 = vsub.f32 %v1428, %v1590
        %v1675 = vsub.f32 %v1430, %v1590
        %v1676 = vsub.f32 %v1434, %v1593
        %v1677 = vsub.f32 %v1436, %v1593
        %v1678 = vsub.f32 %v1440, %v1596
        %v1679 = vsub.f32 %v1442, %v1596
        %v1680 = vsub.f32 %v1446, %v1599
        %v1681 = vsub.f32 %v1448, %v1599
        %v1682 = vsub.f32 %v1452, %v1602
        %v1683 = vsub.f32 %v1454, %v1602
        %v1684 = vsub.f32 %v1458, %v1605
        %v1685 = vsub.f32 %v1460, %v1605
        %v1686 = vsub.f32 %v1464, %v1608
        %v1687 = vsub.f32 %v1466, %v1608
        %v1688 = vsub.f32 %v1470, %v1611
        %v1689 = vsub.f32 %v1472, %v1611
        %v1690 = vsub.f32 %v1476, %v1614
        %v1691 = vsub.f32 %v1478, %v1614
        %v1692 = vsub.f32 %v1482, %v1617
        %v1693 = vsub.f32 %v1484, %v1617
        %v1694 = vsub.f32 %v1488, %v1620
        %v1695 = vsub.f32 %v1490, %v1620
        %v1696 = vsub.f32 %v1494, %v1623
        %v1697 = vsub.f32 %v1496, %v1623
        %v1698 = vsub.f32 %v1500, %v1626
        %v1699 = vsub.f32 %v1502, %v1626
        %v1700 = vsub.f32 %v1506, %v1629
        %v1701 = vsub.f32 %v1508, %v1629
        %v1702 = vsub.f32 %v1512, %v1632
        %v1703 = vsub.f32 %v1514, %v1632
        %v1704 = vsub.f32 %v1518, %v1635
        %v1705 = vsub.f32 %v1520, %v1635
        %v1706 = vsub.f32 %v1524, %v1638
        %v1707 = vsub.f32 %v1526, %v1638
        %v1708 = vsub.f32 %v1530, %v1641
        %v1709 = vsub.f32 %v1532, %v1641
        %v1710 = vsub.f32 %v1536, %v1644
        %v1711 = vsub.f32 %v1538, %v1644
        %v1712 = vsub.f32 %v1542, %v1647
        %v1713 = vsub.f32 %v1544, %v1647
        %v1714 = vsub.f32 %v1548, %v1650
        %v1715 = vsub.f32 %v1550, %v1650
        %v1716 = vsub.f32 %v1554, %v1653
        %v1717 = vsub.f32 %v1556, %v1653
        %v1718 = vmul.f32 %v1654, 1.442695
        %v1719 = vpow.pop %v1718
        %v1720 = vmul.f32 %v1655, 1.442695
        %v1721 = vpow.pop %v1720
        %v1722 = vmul.f32 %v1656, 1.442695
        %v1723 = vpow.pop %v1722
        %v1724 = vmul.f32 %v1657, 1.442695
        %v1725 = vpow.pop %v1724
        %v1726 = vmul.f32 %v1658, 1.442695
        %v1727 = vpow.pop %v1726
        %v1728 = vmul.f32 %v1659, 1.442695
        %v1729 = vpow.pop %v1728
        %v1730 = vmul.f32 %v1660, 1.442695
        %v1731 = vpow.pop %v1730
        %v1732 = vmul.f32 %v1661, 1.442695
        %v1733 = vpow.pop %v1732
        %v1734 = vmul.f32 %v1662, 1.442695
        %v1735 = vpow.pop %v1734
        %v1736 = vmul.f32 %v1663, 1.442695
        %v1737 = vpow.pop %v1736
        %v1738 = vmul.f32 %v1664, 1.442695
        %v1739 = vpow.pop %v1738
        %v1740 = vmul.f32 %v1665, 1.442695
        %v1741 = vpow.pop %v1740
        %v1742 = vmul.f32 %v1666, 1.442695
        %v1743 = vpow.pop %v1742
        %v1744 = vmul.f32 %v1667, 1.442695
        %v1745 = vpow.pop %v1744
        %v1746 = vmul.f32 %v1668, 1.442695
        %v1747 = vpow.pop %v1746
        %v1748 = vmul.f32 %v1669, 1.442695
        %v1749 = vpow.pop %v1748
        %v1750 = vmul.f32 %v1670, 1.442695
        %v1751 = vpow.pop %v1750
        %v1752 = vmul.f32 %v1671, 1.442695
        %v1753 = vpow.pop %v1752
        %v1754 = vmul.f32 %v1672, 1.442695
        %v1755 = vpow.pop %v1754
        %v1756 = vmul.f32 %v1673, 1.442695
        %v1757 = vpow.pop %v1756
        %v1758 = vmul.f32 %v1674, 1.442695
        %v1759 = vpow.pop %v1758
        %v1760 = vmul.f32 %v1675, 1.442695
        %v1761 = vpow.pop %v1760
        %v1762 = vmul.f32 %v1676, 1.442695
        %v1763 = vpow.pop %v1762
        %v1764 = vmul.f32 %v1677, 1.442695
        %v1765 = vpow.pop %v1764
        %v1766 = vmul.f32 %v1678, 1.442695
        %v1767 = vpow.pop %v1766
        %v1768 = vmul.f32 %v1679, 1.442695
        %v1769 = vpow.pop %v1768
        %v1770 = vmul.f32 %v1680, 1.442695
        %v1771 = vpow.pop %v1770
        %v1772 = vmul.f32 %v1681, 1.442695
        %v1773 = vpow.pop %v1772
        %v1774 = vmul.f32 %v1682, 1.442695
        %v1775 = vpow.pop %v1774
        %v1776 = vmul.f32 %v1683, 1.442695
        %v1777 = vpow.pop %v1776
        %v1778 = vmul.f32 %v1684, 1.442695
        %v1779 = vpow.pop %v1778
        %v1780 = vmul.f32 %v1685, 1.442695
        %v1781 = vpow.pop %v1780
        %v1782 = vmul.f32 %v1686, 1.442695
        %v1783 = vpow.pop %v1782
        %v1784 = vmul.f32 %v1687, 1.442695
        %v1785 = vpow.pop %v1784
        %v1786 = vmul.f32 %v1688, 1.442695
        %v1787 = vpow.pop %v1786
        %v1788 = vmul.f32 %v1689, 1.442695
        %v1789 = vpow.pop %v1788
        %v1790 = vmul.f32 %v1690, 1.442695
        %v1791 = vpow.pop %v1790
        %v1792 = vmul.f32 %v1691, 1.442695
        %v1793 = vpow.pop %v1792
        %v1794 = vmul.f32 %v1692, 1.442695
        %v1795 = vpow.pop %v1794
        %v1796 = vmul.f32 %v1693, 1.442695
        %v1797 = vpow.pop %v1796
        %v1798 = vmul.f32 %v1694, 1.442695
        %v1799 = vpow.pop %v1798
        %v1800 = vmul.f32 %v1695, 1.442695
        %v1801 = vpow.pop %v1800
        %v1802 = vmul.f32 %v1696, 1.442695
        %v1803 = vpow.pop %v1802
        %v1804 = vmul.f32 %v1697, 1.442695
        %v1805 = vpow.pop %v1804
        %v1806 = vmul.f32 %v1698, 1.442695
        %v1807 = vpow.pop %v1806
        %v1808 = vmul.f32 %v1699, 1.442695
        %v1809 = vpow.pop %v1808
        %v1810 = vmul.f32 %v1700, 1.442695
        %v1811 = vpow.pop %v1810
        %v1812 = vmul.f32 %v1701, 1.442695
        %v1813 = vpow.pop %v1812
        %v1814 = vmul.f32 %v1702, 1.442695
        %v1815 = vpow.pop %v1814
        %v1816 = vmul.f32 %v1703, 1.442695
        %v1817 = vpow.pop %v1816
        %v1818 = vmul.f32 %v1704, 1.442695
        %v1819 = vpow.pop %v1818
        %v1820 = vmul.f32 %v1705, 1.442695
        %v1821 = vpow.pop %v1820
        %v1822 = vmul.f32 %v1706, 1.442695
        %v1823 = vpow.pop %v1822
        %v1824 = vmul.f32 %v1707, 1.442695
        %v1825 = vpow.pop %v1824
        %v1826 = vmul.f32 %v1708, 1.442695
        %v1827 = vpow.pop %v1826
        %v1828 = vmul.f32 %v1709, 1.442695
        %v1829 = vpow.pop %v1828
        %v1830 = vmul.f32 %v1710, 1.442695
        %v1831 = vpow.pop %v1830
        %v1832 = vmul.f32 %v1711, 1.442695
        %v1833 = vpow.pop %v1832
        %v1834 = vmul.f32 %v1712, 1.442695
        %v1835 = vpow.pop %v1834
        %v1836 = vmul.f32 %v1713, 1.442695
        %v1837 = vpow.pop %v1836
        %v1838 = vmul.f32 %v1714, 1.442695
        %v1839 = vpow.pop %v1838
        %v1840 = vmul.f32 %v1715, 1.442695
        %v1841 = vpow.pop %v1840
        %v1842 = vmul.f32 %v1716, 1.442695
        %v1843 = vpow.pop %v1842
        %v1844 = vmul.f32 %v1717, 1.442695
        %v1845 = vpow.pop %v1844
        %v1846 = vadd.f32 %v1719, %v1721
        %1847 = vadd.xlane.f32.xlu0 %v1846
        %v1848 = vpop.xlane.xlu0 %1847
        %v1849 = vadd.f32 %v1723, %v1725
        %1850 = vadd.xlane.f32.xlu0 %v1849
        %v1851 = vpop.xlane.xlu0 %1850
        %v1852 = vadd.f32 %v1727, %v1729
        %1853 = vadd.xlane.f32.xlu0 %v1852
        %v1854 = vpop.xlane.xlu0 %1853
        %v1855 = vadd.f32 %v1731, %v1733
        %1856 = vadd.xlane.f32.xlu0 %v1855
        %v1857 = vpop.xlane.xlu0 %1856
        %v1858 = vadd.f32 %v1735, %v1737
        %1859 = vadd.xlane.f32.xlu0 %v1858
        %v1860 = vpop.xlane.xlu0 %1859
        %v1861 = vadd.f32 %v1739, %v1741
        %1862 = vadd.xlane.f32.xlu0 %v1861
        %v1863 = vpop.xlane.xlu0 %1862
        %v1864 = vadd.f32 %v1743, %v1745
        %1865 = vadd.xlane.f32.xlu0 %v1864
        %v1866 = vpop.xlane.xlu0 %1865
        %v1867 = vadd.f32 %v1747, %v1749
        %1868 = vadd.xlane.f32.xlu0 %v1867
        %v1869 = vpop.xlane.xlu0 %1868
        %v1870 = vadd.f32 %v1751, %v1753
        %1871 = vadd.xlane.f32.xlu0 %v1870
        %v1872 = vpop.xlane.xlu0 %1871
        %v1873 = vadd.f32 %v1755, %v1757
        %1874 = vadd.xlane.f32.xlu0 %v1873
        %v1875 = vpop.xlane.xlu0 %1874
        %v1876 = vadd.f32 %v1759, %v1761
        %1877 = vadd.xlane.f32.xlu0 %v1876
        %v1878 = vpop.xlane.xlu0 %1877
        %v1879 = vadd.f32 %v1763, %v1765
        %1880 = vadd.xlane.f32.xlu0 %v1879
        %v1881 = vpop.xlane.xlu0 %1880
        %v1882 = vadd.f32 %v1767, %v1769
        %1883 = vadd.xlane.f32.xlu0 %v1882
        %v1884 = vpop.xlane.xlu0 %1883
        %v1885 = vadd.f32 %v1771, %v1773
        %1886 = vadd.xlane.f32.xlu0 %v1885
        %v1887 = vpop.xlane.xlu0 %1886
        %v1888 = vadd.f32 %v1775, %v1777
        %1889 = vadd.xlane.f32.xlu0 %v1888
        %v1890 = vpop.xlane.xlu0 %1889
        %v1891 = vadd.f32 %v1779, %v1781
        %1892 = vadd.xlane.f32.xlu0 %v1891
        %v1893 = vpop.xlane.xlu0 %1892
        %v1894 = vadd.f32 %v1783, %v1785
        %1895 = vadd.xlane.f32.xlu0 %v1894
        %v1896 = vpop.xlane.xlu0 %1895
        %v1897 = vadd.f32 %v1787, %v1789
        %1898 = vadd.xlane.f32.xlu0 %v1897
        %v1899 = vpop.xlane.xlu0 %1898
        %v1900 = vadd.f32 %v1791, %v1793
        %1901 = vadd.xlane.f32.xlu0 %v1900
        %v1902 = vpop.xlane.xlu0 %1901
        %v1903 = vadd.f32 %v1795, %v1797
        %1904 = vadd.xlane.f32.xlu0 %v1903
        %v1905 = vpop.xlane.xlu0 %1904
        %v1906 = vadd.f32 %v1799, %v1801
        %1907 = vadd.xlane.f32.xlu0 %v1906
        %v1908 = vpop.xlane.xlu0 %1907
        %v1909 = vadd.f32 %v1803, %v1805
        %1910 = vadd.xlane.f32.xlu0 %v1909
        %v1911 = vpop.xlane.xlu0 %1910
        %v1912 = vadd.f32 %v1807, %v1809
        %1913 = vadd.xlane.f32.xlu0 %v1912
        %v1914 = vpop.xlane.xlu0 %1913
        %v1915 = vadd.f32 %v1811, %v1813
        %1916 = vadd.xlane.f32.xlu0 %v1915
        %v1917 = vpop.xlane.xlu0 %1916
        %v1918 = vadd.f32 %v1815, %v1817
        %1919 = vadd.xlane.f32.xlu0 %v1918
        %v1920 = vpop.xlane.xlu0 %1919
        %v1921 = vadd.f32 %v1819, %v1821
        %1922 = vadd.xlane.f32.xlu0 %v1921
        %v1923 = vpop.xlane.xlu0 %1922
        %v1924 = vadd.f32 %v1823, %v1825
        %1925 = vadd.xlane.f32.xlu0 %v1924
        %v1926 = vpop.xlane.xlu0 %1925
        %v1927 = vadd.f32 %v1827, %v1829
        %1928 = vadd.xlane.f32.xlu0 %v1927
        %v1929 = vpop.xlane.xlu0 %1928
        %v1930 = vadd.f32 %v1831, %v1833
        %1931 = vadd.xlane.f32.xlu0 %v1930
        %v1932 = vpop.xlane.xlu0 %1931
        %v1933 = vadd.f32 %v1835, %v1837
        %1934 = vadd.xlane.f32.xlu0 %v1933
        %v1935 = vpop.xlane.xlu0 %1934
        %v1936 = vadd.f32 %v1839, %v1841
        %1937 = vadd.xlane.f32.xlu0 %v1936
        %v1938 = vpop.xlane.xlu0 %1937
        %v1939 = vadd.f32 %v1843, %v1845
        %1940 = vadd.xlane.f32.xlu0 %v1939
        %v1941 = vpop.xlane.xlu0 %1940
        %v1942 = vrcp.pop %v1848
        %v1943 = vrcp.pop %v1851
        %v1944 = vrcp.pop %v1854
        %v1945 = vrcp.pop %v1857
        %v1946 = vrcp.pop %v1860
        %v1947 = vrcp.pop %v1863
        %v1948 = vrcp.pop %v1866
        %v1949 = vrcp.pop %v1869
        %v1950 = vrcp.pop %v1872
        %v1951 = vrcp.pop %v1875
        %v1952 = vrcp.pop %v1878
        %v1953 = vrcp.pop %v1881
        %v1954 = vrcp.pop %v1884
        %v1955 = vrcp.pop %v1887
        %v1956 = vrcp.pop %v1890
        %v1957 = vrcp.pop %v1893
        %v1958 = vrcp.pop %v1896
        %v1959 = vrcp.pop %v1899
        %v1960 = vrcp.pop %v1902
        %v1961 = vrcp.pop %v1905
        %v1962 = vrcp.pop %v1908
        %v1963 = vrcp.pop %v1911
        %v1964 = vrcp.pop %v1914
        %v1965 = vrcp.pop %v1917
        %v1966 = vrcp.pop %v1920
        %v1967 = vrcp.pop %v1923
        %v1968 = vrcp.pop %v1926
        %v1969 = vrcp.pop %v1929
        %v1970 = vrcp.pop %v1932
        %v1971 = vrcp.pop %v1935
        %v1972 = vrcp.pop %v1938
        %v1973 = vrcp.pop %v1941
        %v1974 = vmul.f32 %v1719, %v1942
        %v1975 = vmul.f32 %v1721, %v1942
        %v1976 = vmul.f32 %v1723, %v1943
        %v1977 = vmul.f32 %v1725, %v1943
        %v1978 = vmul.f32 %v1727, %v1944
        %v1979 = vmul.f32 %v1729, %v1944
        %v1980 = vmul.f32 %v1731, %v1945
        %v1981 = vmul.f32 %v1733, %v1945
        %v1982 = vmul.f32 %v1735, %v1946
        %v1983 = vmul.f32 %v1737, %v1946
        %v1984 = vmul.f32 %v1739, %v1947
        %v1985 = vmul.f32 %v1741, %v1947
        %v1986 = vmul.f32 %v1743, %v1948
        %v1987 = vmul.f32 %v1745, %v1948
        %v1988 = vmul.f32 %v1747, %v1949
        %v1989 = vmul.f32 %v1749, %v1949
        %v1990 = vmul.f32 %v1751, %v1950
        %v1991 = vmul.f32 %v1753, %v1950
        %v1992 = vmul.f32 %v1755, %v1951
        %v1993 = vmul.f32 %v1757, %v1951
        %v1994 = vmul.f32 %v1759, %v1952
        %v1995 = vmul.f32 %v1761, %v1952
        %v1996 = vmul.f32 %v1763, %v1953
        %v1997 = vmul.f32 %v1765, %v1953
        %v1998 = vmul.f32 %v1767, %v1954
        %v1999 = vmul.f32 %v1769, %v1954
        %v2000 = vmul.f32 %v1771, %v1955
        %v2001 = vmul.f32 %v1773, %v1955
        %v2002 = vmul.f32 %v1775, %v1956
        %v2003 = vmul.f32 %v1777, %v1956
        %v2004 = vmul.f32 %v1779, %v1957
        %v2005 = vmul.f32 %v1781, %v1957
        %v2006 = vmul.f32 %v1783, %v1958
        %v2007 = vmul.f32 %v1785, %v1958
        %v2008 = vmul.f32 %v1787, %v1959
        %v2009 = vmul.f32 %v1789, %v1959
        %v2010 = vmul.f32 %v1791, %v1960
        %v2011 = vmul.f32 %v1793, %v1960
        %v2012 = vmul.f32 %v1795, %v1961
        %v2013 = vmul.f32 %v1797, %v1961
        %v2014 = vmul.f32 %v1799, %v1962
        %v2015 = vmul.f32 %v1801, %v1962
        %v2016 = vmul.f32 %v1803, %v1963
        %v2017 = vmul.f32 %v1805, %v1963
        %v2018 = vmul.f32 %v1807, %v1964
        %v2019 = vmul.f32 %v1809, %v1964
        %v2020 = vmul.f32 %v1811, %v1965
        %v2021 = vmul.f32 %v1813, %v1965
        %v2022 = vmul.f32 %v1815, %v1966
        %v2023 = vmul.f32 %v1817, %v1966
        %v2024 = vmul.f32 %v1819, %v1967
        %v2025 = vmul.f32 %v1821, %v1967
        %v2026 = vmul.f32 %v1823, %v1968
        %v2027 = vmul.f32 %v1825, %v1968
        %v2028 = vmul.f32 %v1827, %v1969
        %v2029 = vmul.f32 %v1829, %v1969
        %v2030 = vmul.f32 %v1831, %v1970
        %v2031 = vmul.f32 %v1833, %v1970
        %v2032 = vmul.f32 %v1835, %v1971
        %v2033 = vmul.f32 %v1837, %v1971
        %v2034 = vmul.f32 %v1839, %v1972
        %v2035 = vmul.f32 %v1841, %v1972
        %v2036 = vmul.f32 %v1843, %v1973
        %v2037 = vmul.f32 %v1845, %v1973
        %2038 = vmatprep.subr.mxu0 %v2005
        %2039 = vmatpush1.xpose.msra.mxu0 %v2004
        %2040 = vmatprep.subr.mxu0 %v2003
        %2041 = vmatpush1.xpose.msra.mxu0 %v2002
        %2042 = vmatprep.subr.mxu0 %v2001
        %2043 = vmatpush1.xpose.msra.mxu0 %v2000
        %2044 = vmatprep.subr.mxu0 %v1999
        %2045 = vmatpush1.xpose.msra.mxu0 %v1998
        %2046 = vmatprep.subr.mxu0 %v1997
        %2047 = vmatpush1.xpose.msra.mxu0 %v1996
        %2048 = vmatprep.subr.mxu0 %v1995
        %2049 = vmatpush1.xpose.msra.mxu0 %v1994
        %2050 = vmatprep.subr.mxu0 %v1993
        %2051 = vmatpush1.xpose.msra.mxu0 %v1992
        %2052 = vmatprep.subr.mxu0 %v1991
        %2053 = vmatpush1.xpose.msra.mxu0 %v1990
        %2054 = vmatprep.subr.mxu0 %v1989
        %2055 = vmatpush1.xpose.msra.mxu0 %v1988
        %2056 = vmatprep.subr.mxu0 %v1987
        %2057 = vmatpush1.xpose.msra.mxu0 %v1986
        %2058 = vmatprep.subr.mxu0 %v1985
        %2059 = vmatpush1.xpose.msra.mxu0 %v1984
        %2060 = vmatprep.subr.mxu0 %v1983
        %2061 = vmatpush1.xpose.msra.mxu0 %v1982
        %2062 = vmatprep.subr.mxu0 %v1981
        %2063 = vmatpush1.xpose.msra.mxu0 %v1980
        %2064 = vmatprep.subr.mxu0 %v1979
        %2065 = vmatpush1.xpose.msra.mxu0 %v1978
        %2066 = vmatprep.subr.mxu0 %v1977
        %2067 = vmatpush1.xpose.msra.mxu0 %v1976
        %2068 = vmatprep.subr.mxu0 %v1975
        %2069 = vmatpush1.xpose.msra.mxu0 %v1974
        %2070 = vmatprep.subr.mxu0 %v2037
        %2071 = vmatpush2.xpose.msra.mxu0 %v2036
        %2072 = vmatprep.subr.mxu0 %v2035
        %2073 = vmatpush2.xpose.msra.mxu0 %v2034
        %2074 = vmatprep.subr.mxu0 %v2033
        %2075 = vmatpush2.xpose.msra.mxu0 %v2032
        %2076 = vmatprep.subr.mxu0 %v2031
        %2077 = vmatpush2.xpose.msra.mxu0 %v2030
        %2078 = vmatprep.subr.mxu0 %v2029
        %2079 = vmatpush2.xpose.msra.mxu0 %v2028
        %2080 = vmatprep.subr.mxu0 %v2027
        %2081 = vmatpush2.xpose.msra.mxu0 %v2026
        %2082 = vmatprep.subr.mxu0 %v2025
        %2083 = vmatpush2.xpose.msra.mxu0 %v2024
        %2084 = vmatprep.subr.mxu0 %v2023
        %2085 = vmatpush2.xpose.msra.mxu0 %v2022
        %2086 = vmatprep.subr.mxu0 %v2021
        %2087 = vmatpush2.xpose.msra.mxu0 %v2020
        %2088 = vmatprep.subr.mxu0 %v2019
        %2089 = vmatpush2.xpose.msra.mxu0 %v2018
        %2090 = vmatprep.subr.mxu0 %v2017
        %2091 = vmatpush2.xpose.msra.mxu0 %v2016
        %2092 = vmatprep.subr.mxu0 %v2015
        %2093 = vmatpush2.xpose.msra.mxu0 %v2014
        %2094 = vmatprep.subr.mxu0 %v2013
        %2095 = vmatpush2.xpose.msra.mxu0 %v2012
        %2096 = vmatprep.subr.mxu0 %v2011
        %2097 = vmatpush2.xpose.msra.mxu0 %v2010
        %2098 = vmatprep.subr.mxu0 %v2009
        %2099 = vmatpush2.xpose.msra.mxu0 %v2008
        %2100 = vmatprep.subr.mxu0 %v2007
        %2101 = vmatpush2.xpose.msra.mxu0 %v2006
        %2102 = vmatprep.mubr.f32.mxu0 %v1197
        %2103 = vmatmul.mubr.f32.gmra.mxu0 %v1195
        %v2104 = vpop.f32.mrf.mxu0
        %v2105 = vadd.f32 0.0, %v2104
        %v2106 = vpop.f32.mrf.mxu0
        %v2107 = vadd.f32 0.0, %v2106
        %2108 = vdwg.mxu0
        %2110 = vset.pattern.permute.xlu0 0
        %2111 = vperm.xlu0 %2110, %v385
        %v2112 = vpop.permute.xlu0 %2111
        %v2115 = vsel %vm464, %v384, 0
        %v2118 = vsel %vm422, %v2105, 0
        %v2121 = vsel %vm422, %v2107, 0
        %2123 = vmatprep.subr.mxu0 0.0
        %2124 = vmatpush1.msra.mxu0 0.0
        %2125 = vmatprep.subr.mxu0 0.0
        %2126 = vmatpush1.msra.mxu0 0.0
        %2127 = vmatprep.subr.mxu0 0.0
        %2128 = vmatpush1.msra.mxu0 0.0
        %2129 = vmatprep.subr.mxu0 0.0
        %2130 = vmatpush1.msra.mxu0 0.0
        %2131 = vmatprep.subr.mxu0 0.0
        %2132 = vmatpush1.msra.mxu0 0.0
        %2133 = vmatprep.subr.mxu0 0.0
        %2134 = vmatpush1.msra.mxu0 0.0
        %2135 = vmatprep.subr.mxu0 0.0
        %2136 = vmatpush1.msra.mxu0 0.0
        %2137 = vmatprep.subr.mxu0 0.0
        %2138 = vmatpush1.msra.mxu0 0.0
        %2139 = vmatprep.subr.mxu0 0.0
        %2140 = vmatpush1.msra.mxu0 0.0
        %2141 = vmatprep.subr.mxu0 0.0
        %2142 = vmatpush1.msra.mxu0 0.0
        %2143 = vmatprep.subr.mxu0 0.0
        %2144 = vmatpush1.msra.mxu0 0.0
        %2145 = vmatprep.subr.mxu0 0.0
        %2146 = vmatpush1.msra.mxu0 0.0
        %2147 = vmatprep.subr.mxu0 0.0
        %2148 = vmatpush1.msra.mxu0 0.0
        %2149 = vmatprep.subr.mxu0 0.0
        %2150 = vmatpush1.msra.mxu0 0.0
        %2151 = vmatprep.subr.mxu0 0.0
        %2152 = vmatpush1.msra.mxu0 0.0
        %2153 = vmatprep.subr.mxu0 %v2121
        %2154 = vmatpush1.msra.mxu0 %v2118
        %2155 = vmatprep.subr.mxu0 0.0
        %2156 = vmatpush2.msra.mxu0 0.0
        %2157 = vmatprep.subr.mxu0 0.0
        %2158 = vmatpush2.msra.mxu0 0.0
        %2159 = vmatprep.subr.mxu0 0.0
        %2160 = vmatpush2.msra.mxu0 0.0
        %2161 = vmatprep.subr.mxu0 0.0
        %2162 = vmatpush2.msra.mxu0 0.0
        %2163 = vmatprep.subr.mxu0 0.0
        %2164 = vmatpush2.msra.mxu0 0.0
        %2165 = vmatprep.subr.mxu0 0.0
        %2166 = vmatpush2.msra.mxu0 0.0
        %2167 = vmatprep.subr.mxu0 0.0
        %2168 = vmatpush2.msra.mxu0 0.0
        %2169 = vmatprep.subr.mxu0 0.0
        %2170 = vmatpush2.msra.mxu0 0.0
        %2171 = vmatprep.subr.mxu0 0.0
        %2172 = vmatpush2.msra.mxu0 0.0
        %2173 = vmatprep.subr.mxu0 0.0
        %2174 = vmatpush2.msra.mxu0 0.0
        %2175 = vmatprep.subr.mxu0 0.0
        %2176 = vmatpush2.msra.mxu0 0.0
        %2177 = vmatprep.subr.mxu0 0.0
        %2178 = vmatpush2.msra.mxu0 0.0
        %2179 = vmatprep.subr.mxu0 0.0
        %2180 = vmatpush2.msra.mxu0 0.0
        %2181 = vmatprep.subr.mxu0 0.0
        %2182 = vmatpush2.msra.mxu0 0.0
        %2183 = vmatprep.subr.mxu0 0.0
        %2184 = vmatpush2.msra.mxu0 0.0
        %2185 = vmatprep.subr.mxu0 0.0
        %2186 = vmatpush2.msra.mxu0 0.0
        %2187 = vmatprep.mubr.f32.mxu0 0.0
        %2188 = vmatmul.mubr.f32.gmra.mxu0 %v2115
        %v2189 = vpop.f32.mrf.mxu0
        %v2190 = vadd.f32 %v2112, %v2189
        %v2191 = vpop.f32.mrf.mxu0
        %v2192 = vadd.f32 %v2112, %v2191
        %2193 = vdwg.mxu0
        %v2195 = vadd.f32 %v2190, %v463
        %v2196 = vadd.f32 %v2192, %v1041
        %v2199 = vcombine.low %v2195, %v2196
        %2201 = vst [vmem:[%s367] sm:$0xff] %v2199
        %s2202 = sand.u32 %s252, 1
        %s2203 = scalar_lea.sflag [#allocation3], %s2202
        %s2204 = sand.u32 %s252, 1
        %s2205 = smul.addr %s2204, 8
        %s2206 = scalar_lea.vmem [#allocation2], %s2205
        // Predicated region
        $region61: #{tpu_custom_call.1} parent=59 // pred_check
          %p2207 = pneg %p262
        $region62: #{tpu_custom_call.1} parent=59 // pred_check_branch
          %2209 = sbr.rel (%p2207) target = $region64
        $region63: #{tpu_custom_call.1} parent=59 // pred_region
          %s2211 = ssub.s32 128, 128
          %2212 = vsyncadd %s2203, %s2211
          %s2213 = smul.addr %s24, 2
          %s2214 = smul.addr %s2213, 64
          %s2215 = scalar_lea.hbm %s10, %s2214
          %s2217 = sshll.u32 %s2206, 4
          %s2218 = int_to_ptr.vmem [resolvable:$true] %s2217
          %2220 = dma.vmem_to_hbm [thread:$0]  %s2218, 128, %s2215, %s2203
        $region64: #{tpu_custom_call.1} parent=59 // pred_fallthru
          _
      $region60: #{tpu_custom_call.1} parent=5 // pred_fallthru
        _
      %p2221 = scmp.le.s32.totalorder 2, %s19
      // Predicated region
      $region65: #{tpu_custom_call.1} parent=5 // pred_check
        %p2222 = pneg %p2221
      $region66: #{tpu_custom_call.1} parent=5 // pred_check_branch
        %2224 = sbr.rel (%p2222) target = $region68
      $region67: #{tpu_custom_call.1} parent=5 // pred_region
        %s2225 = ssub.s32 %s19, 2
        // Predicated region
        $region69: #{tpu_custom_call.1} parent=67 // pred_check
          %p2226 = pneg %p268
        $region70: #{tpu_custom_call.1} parent=67 // pred_check_branch
          %2228 = sbr.rel (%p2226) target = $region72
        $region71: #{tpu_custom_call.1} parent=67 // pred_region
          %s2229 = sand.u32 %s253, 1
          %s2230 = scalar_lea.sflag [#allocation3], %s2229
          %s2231 = sand.u32 %s253, 1
          %s2232 = smul.addr %s2231, 8
          %s2233 = scalar_lea.vmem [#allocation2], %s2232
          %2234 = dma.done %s2230, 128
        $region72: #{tpu_custom_call.1} parent=67 // pred_fallthru
          _
      $region68: #{tpu_custom_call.1} parent=5 // pred_fallthru
        _
    $region6: #{tpu_custom_call.1} parent=1 // loop_footer
      %s23 = sadd.s32 1, %s19
    $region7: #{tpu_custom_call.1} parent=1 // loop_footer_branch
      %18 = sbr.rel target = $region3
    $region8: #{tpu_custom_call.1} parent=1 // loop_exit
      _
    %2235 = vsyncpa [#allocation3], 1
    %s2236 = scalar_lea.sflag [#allocation3], 1
    %2237 = vsyncpa %s2236, 1

</llo_original>
